<compile_context>
chip_gen: v7x
topology: tpu7x:2x2x1
jax: 0.10.0
libtpu: 0.0.40
codegen_flags: <defaults>
</compile_context>

<pallas_src>
import math
from functools import partial

import jax
import jax.numpy as jnp
from jax.experimental import pallas as pl
from jax.experimental.pallas import tpu as pltpu


# ---------------------------------------------------------------------------
# helpers
# ---------------------------------------------------------------------------
def _round_up(n, m):
    return -(-n // m) * m


def _pick_div(n, cands):
    for c in cands:
        if n % c == 0:
            return c
    return n


def _layernorm(x, w, b, eps=1e-5):
    """Two-pass LayerNorm in f32 (matches torch.nn.LayerNorm numerics)."""
    xf = x.astype(jnp.float32)
    mu = jnp.mean(xf, axis=-1, keepdims=True)
    xc = xf - mu
    var = jnp.mean(xc * xc, axis=-1, keepdims=True)
    return xc * (jax.lax.rsqrt(var + eps) * w) + b


def _vmem_budget():
    """Returns (scoped vmem limit to request, is_small_vmem_chip)."""
    try:
        cap = pltpu.get_tpu_info().vmem_capacity_bytes
    except Exception:
        cap = 64 * 1024 * 1024            # unknown -> assume v7x-like (conservative)
    limit = int(min(cap * 3 // 4, 100 * 1024 * 1024))
    return limit, cap <= 80 * 1024 * 1024


def _exp_dtype():
    """bf16 softmax exp on v6e/v7x (EUP has a bf16 path); f32 otherwise."""
    try:
        kind = jax.devices()[0].device_kind.lower()
    except Exception:
        return jnp.float32
    if ("v6" in kind) or ("v7" in kind) or ("tpu7" in kind):
        return jnp.bfloat16
    return jnp.float32


def _const2(*_):
    return (0, 0)


# ---------------------------------------------------------------------------
# stage 1: LN1 + fused QKV projection (scale/bias folded into packed weight)
# ---------------------------------------------------------------------------
def _ln_qkv_kernel(x_ref, ln1w_ref, ln1b_ref, wqkv_ref, bqkv_ref,
                   q_ref, k_ref, v_ref, *, n_head):
    x = x_ref[0]                                        # (tq, D) f32
    tq, D = x.shape
    hd = D // n_head

    h = _layernorm(x, ln1w_ref[0], ln1b_ref[0]).astype(jnp.bfloat16)
    qkv = jnp.dot(h, wqkv_ref[...],
                  preferred_element_type=jnp.float32) + bqkv_ref[0]   # (tq, 3D)

    q = qkv[:, :D].astype(jnp.bfloat16)
    k = qkv[:, D:2 * D].astype(jnp.bfloat16)
    v = qkv[:, 2 * D:].astype(jnp.bfloat16)

    # q stays lane-dense (tq, D); head split happens per-tile inside stage 2.
    q_ref[0] = q

    # k stored head-major *transposed* (H, hd, tq): lane dim = tq (dense store)
    # and the q @ k^T contraction in stage 2 becomes MXU-native (hd contraction).
    k_hm = jnp.transpose(k.reshape(tq, n_head, hd), (1, 0, 2))   # (H, tq, hd)
    k_ref[0] = jnp.transpose(k_hm, (0, 2, 1))                    # (H, hd, tq)

    # TODO(synk): v store is lane-sparse when hd < 128 (e.g. Whisper hd=64);
    # kept head-major so the p @ v matmul in stage 2 is MXU-native.
    v_ref[0] = jnp.transpose(v.reshape(tq, n_head, hd), (1, 0, 2))   # (H, tq, hd)


# ---------------------------------------------------------------------------
# stage 2: flash attention, K/V VMEM-resident per batch, in-kernel KV loop
# ---------------------------------------------------------------------------
def _attn_kernel(q_ref, k_ref, v_ref, o_ref, *,
                 n_head, t_real, mask_keys, exp_dtype):
    q = q_ref[0]                                        # (tq, D) bf16
    tq, D = q.shape
    hd = D // n_head
    qh = jnp.transpose(q.reshape(tq, n_head, hd), (1, 0, 2))     # (H, tq, hd)

    nk = k_ref.shape[0]                                 # number of KV tiles
    tk = k_ref.shape[-1]                                # KV tile length

    def body(i, carry):
        m, l, acc = carry
        kt = k_ref[i]                                   # (H, hd, tk)  VMEM slice
        vt = v_ref[i]                                   # (H, tk, hd)
        s = jnp.einsum('hqd,hdk->hqk', qh, kt,
                       preferred_element_type=jnp.float32)        # (H, tq, tk)
        if mask_keys:
            col = i * tk + jax.lax.broadcasted_iota(jnp.int32, (1, 1, tk), 2)
            s = jnp.where(col < t_real, s, -1e30)       # finite mask: no inf-inf NaN
        m_new = jnp.maximum(m, jnp.max(s, axis=-1, keepdims=True))
        alpha = jnp.exp(m - m_new)                      # f32 bookkeeping
        p = jnp.exp((s - m_new).astype(exp_dtype))      # bf16 exp on v6e/v7x
        l_new = alpha * l + jnp.sum(p, axis=-1, keepdims=True, dtype=jnp.float32)
        acc_new = alpha * acc + jnp.einsum(
            'hqk,hkd->hqd', p.astype(jnp.bfloat16), vt,
            preferred_element_type=jnp.float32)
        return m_new, l_new, acc_new

    m0 = jnp.full((n_head, tq, 1), -1e30, dtype=jnp.float32)
    l0 = jnp.zeros((n_head, tq, 1), dtype=jnp.float32)
    a0 = jnp.zeros((n_head, tq, hd), dtype=jnp.float32)
    m, l, acc = jax.lax.fori_loop(0, nk, body, (m0, l0, a0), unroll=(nk <= 8))

    o = acc * pl.reciprocal(l, approx=True)             # EUP, free slot
    o_ref[0] = jnp.transpose(o, (1, 0, 2)).reshape(tq, D).astype(o_ref.dtype)


# ---------------------------------------------------------------------------
# stage 3: out-projection + residual + LN2 + MLP (4*D dim streamed)
# ---------------------------------------------------------------------------
def _out_mlp_kernel(x_ref, ctx_ref, wo_ref, bo_ref, ln2w_ref, ln2b_ref,
                    w1_ref, b1_ref, w2_ref, b2_ref,
                    y_ref, x1_s, h2_s, acc_s):
    kk = pl.program_id(1)

    @pl.when(kk == 0)
    def _():
        attn = jnp.dot(ctx_ref[...], wo_ref[...],
                       preferred_element_type=jnp.float32) + bo_ref[0]
        x1 = x_ref[...].astype(jnp.float32) + attn               # residual 1
        x1_s[...] = x1
        h2_s[...] = _layernorm(x1, ln2w_ref[0], ln2b_ref[0]).astype(jnp.bfloat16)
        acc_s[...] = jnp.zeros(acc_s.shape, dtype=acc_s.dtype)

    # one slab of the 4*D hidden dim per grid step (weight streaming)
    m1 = jnp.dot(h2_s[...], w1_ref[...],
                 preferred_element_type=jnp.float32) + b1_ref[0]
    # exact erf GELU in f32 (matches torch nn.GELU default)
    g = 0.5 * m1 * (1.0 + jax.lax.erf(m1 * (1.0 / math.sqrt(2.0))))
    acc_s[...] += jnp.dot(g.astype(jnp.bfloat16), w2_ref[...],
                          preferred_element_type=jnp.float32)

    @pl.when(kk == pl.num_programs(1) - 1)
    def _():
        y_ref[...] = (x1_s[...] + acc_s[...] + b2_ref[0]).astype(y_ref.dtype)


# ---------------------------------------------------------------------------
# one-time parameter preparation (bf16 cast, QKV packing, scale folding)
# ---------------------------------------------------------------------------
def prepare_params(raw, n_head):
    D = raw["wq_t"].shape[0]
    hd = D // n_head
    scale = float(hd) ** (-0.25)
    bf16 = jnp.bfloat16
    wqkv = jnp.concatenate(
        [raw["wq_t"] * scale, raw["wk_t"] * scale, raw["wv_t"]],
        axis=1).astype(bf16)
    bqkv = jnp.concatenate(
        [raw["bq"] * scale, jnp.zeros_like(raw["bq"]), raw["bv"]],
        axis=1).astype(jnp.float32)
    return {
        "ln1_w": raw["ln1_w"], "ln1_b": raw["ln1_b"],
        "wqkv": wqkv, "bqkv": bqkv,
        "wo": raw["wo_t"].astype(bf16), "bo": raw["bo"],
        "ln2_w": raw["ln2_w"], "ln2_b": raw["ln2_b"],
        "w1": raw["w1_t"].astype(bf16), "b1": raw["b1"],
        "w2": raw["w2_t"].astype(bf16), "b2": raw["b2"],
    }


# ---------------------------------------------------------------------------
# wrapper
# ---------------------------------------------------------------------------
def residual_attention_block(x, p, n_head):
    """x: (B, T, D) float32.  p: output of prepare_params (weights already bf16)."""
    B, T, D = x.shape
    D4 = 4 * D
    hd = D // n_head
    f32, bf16 = jnp.float32, jnp.bfloat16

    vmem_limit, small_vmem = _vmem_budget()
    exp_dtype = _exp_dtype()

    # --- pad T so tiles are (8,128)-friendly; padded keys get masked ---------
    gran = 128 if T > 128 else 8
    T_pad = _round_up(T, gran)
    x_p = jnp.pad(x, ((0, 0), (0, T_pad - T), (0, 0))) if T_pad != T else x
    mask_keys = (T_pad != T)

    tq = _pick_div(T_pad, (256, 128, 64, 32, 16, 8))
    nq = T_pad // tq
    tk4 = _pick_div(D4, (512, 256, 128, 64, 32, 16, 8))
    nk4 = D4 // tk4

    rows_total = B * T_pad
    row_cands = (512, 256, 128, 64, 32, 16, 8) if small_vmem \
        else (1024, 512, 256, 128, 64, 32, 16, 8)
    rows = _pick_div(rows_total, row_cands)
    nr = rows_total // rows

    # ---- stage 1: LN1 + fused QKV -------------------------------------------
    q, k, v = pl.pallas_call(
        partial(_ln_qkv_kernel, n_head=n_head),
        out_shape=(
            jax.ShapeDtypeStruct((B, T_pad, D), bf16),
            jax.ShapeDtypeStruct((B * nq, n_head, hd, tq), bf16),
            jax.ShapeDtypeStruct((B * nq, n_head, tq, hd), bf16),
        ),
        grid=(B, nq),
        in_specs=[
            pl.BlockSpec((1, tq, D), lambda b, t: (b, t, 0)),
            pl.BlockSpec((1, D), _const2),
            pl.BlockSpec((1, D), _const2),
            pl.BlockSpec((D, 3 * D), _const2),          # packed QKV weight
            pl.BlockSpec((1, 3 * D), _const2),
        ],
        out_specs=(
            pl.BlockSpec((1, tq, D), lambda b, t: (b, t, 0)),
            pl.BlockSpec((1, n_head, hd, tq), lambda b, t: (b * nq + t, 0, 0, 0)),
            pl.BlockSpec((1, n_head, tq, hd), lambda b, t: (b * nq + t, 0, 0, 0)),
        ),
        compiler_params=pltpu.CompilerParams(
            dimension_semantics=("parallel", "parallel"),
            vmem_limit_bytes=vmem_limit),
    )(x_p, p["ln1_w"], p["ln1_b"], p["wqkv"], p["bqkv"])

    # ---- stage 2: flash attention, K/V resident in VMEM per batch -----------
    ctx = pl.pallas_call(
        partial(_attn_kernel, n_head=n_head, t_real=T,
                mask_keys=mask_keys, exp_dtype=exp_dtype),
        out_shape=jax.ShapeDtypeStruct((B, T_pad, D), bf16),
        grid=(B, nq),
        in_specs=[
            pl.BlockSpec((1, tq, D), lambda b, t: (b, t, 0)),
            # full K / V for the batch; index constant across q tiles -> one DMA per batch
            pl.BlockSpec((nq, n_head, hd, tq), lambda b, t: (b, 0, 0, 0)),
            pl.BlockSpec((nq, n_head, tq, hd), lambda b, t: (b, 0, 0, 0)),
        ],
        out_specs=pl.BlockSpec((1, tq, D), lambda b, t: (b, t, 0)),
        compiler_params=pltpu.CompilerParams(
            dimension_semantics=("parallel", "parallel"),
            vmem_limit_bytes=vmem_limit),
    )(q, k, v)

    # ---- stage 3: out-proj + residual + LN2 + MLP (flattened row tiles) -----
    xr = x_p.reshape(rows_total, D)
    cr = ctx.reshape(rows_total, D)
    y = pl.pallas_call(
        _out_mlp_kernel,
        out_shape=jax.ShapeDtypeStruct((rows_total, D), x.dtype),
        grid=(nr, nk4),
        in_specs=[
            pl.BlockSpec((rows, D), lambda r, kk: (r, 0)),      # x rows
            pl.BlockSpec((rows, D), lambda r, kk: (r, 0)),      # attn ctx rows
            pl.BlockSpec((D, D), _const2),                      # Wo^T
            pl.BlockSpec((1, D), _const2),                      # bo
            pl.BlockSpec((1, D), _const2),                      # ln2 w
            pl.BlockSpec((1, D), _const2),                      # ln2 b
            pl.BlockSpec((D, tk4), lambda r, kk: (0, kk)),      # W1^T slab
            pl.BlockSpec((1, tk4), lambda r, kk: (0, kk)),      # b1 slab
            pl.BlockSpec((tk4, D), lambda r, kk: (kk, 0)),      # W2^T slab
            pl.BlockSpec((1, D), _const2),                      # b2
        ],
        out_specs=pl.BlockSpec((rows, D), lambda r, kk: (r, 0)),
        scratch_shapes=[
            pltpu.VMEM((rows, D), f32),     # x1 (residual carrier)
            pltpu.VMEM((rows, D), bf16),    # LN2(x1) as MXU input
            pltpu.VMEM((rows, D), f32),     # MLP accumulator
        ],
        compiler_params=pltpu.CompilerParams(
            dimension_semantics=("parallel", "arbitrary"),
            vmem_limit_bytes=vmem_limit),
    )(xr, cr, p["wo"], p["bo"], p["ln2_w"], p["ln2_b"],
      p["w1"], p["b1"], p["w2"], p["b2"])

    y = y.reshape(B, T_pad, D)
    return y[:, :T, :] if T_pad != T else y

    # TODO(synk): mask argument, kv_cache and cross-attention paths of the
    # PyTorch module are not implemented (defaults: mask=None, kv_cache=None,
    # cross_attention=False).


# ---------------------------------------------------------------------------
# plain-JAX f32 reference (mirrors the PyTorch forward) for verification
# ---------------------------------------------------------------------------
def _reference(x, p, n_head):
    B, T, D = x.shape
    hd = D // n_head
    scale = float(hd) ** (-0.25)

    def ln(v, w, b):
        mu = jnp.mean(v, axis=-1, keepdims=True)
        var = jnp.mean((v - mu) ** 2, axis=-1, keepdims=True)
        return (v - mu) / jnp.sqrt(var + 1e-5) * w[0] + b[0]

    h = ln(x, p["ln1_w"], p["ln1_b"])
    q = h @ p["wq_t"] + p["bq"][0]
    k = h @ p["wk_t"]
    v = h @ p["wv_t"] + p["bv"][0]
    qh = q.reshape(B, T, n_head, hd).transpose(0, 2, 1, 3) * scale
    kh = k.reshape(B, T, n_head, hd).transpose(0, 2, 3, 1) * scale
    vh = v.reshape(B, T, n_head, hd).transpose(0, 2, 1, 3)
    w = jax.nn.softmax(qh @ kh, axis=-1)
    wv = (w @ vh).transpose(0, 2, 1, 3).reshape(B, T, D)
    x = x + (wv @ p["wo_t"] + p["bo"][0])
    h2 = ln(x, p["ln2_w"], p["ln2_b"])
    m1 = h2 @ p["w1_t"] + p["b1"][0]
    g = 0.5 * m1 * (1.0 + jax.lax.erf(m1 / math.sqrt(2.0)))
    return x + (g @ p["w2_t"] + p["b2"][0])


if __name__ == "__main__":
    def make_params(key, D):
        D4 = 4 * D
        ks = jax.random.split(key, 16)

        def rnd(k, shape, s=0.05):
            return jax.random.normal(k, shape, dtype=jnp.float32) * s

        return {
            "ln1_w": 1.0 + rnd(ks[12], (1, D)),
            "ln1_b": rnd(ks[13], (1, D)),
            "wq_t": rnd(ks[0], (D, D)), "bq": rnd(ks[1], (1, D)),
            "wk_t": rnd(ks[2], (D, D)),
            "wv_t": rnd(ks[3], (D, D)), "bv": rnd(ks[4], (1, D)),
            "wo_t": rnd(ks[5], (D, D)), "bo": rnd(ks[6], (1, D)),
            "ln2_w": 1.0 + rnd(ks[14], (1, D)),
            "ln2_b": rnd(ks[15], (1, D)),
            "w1_t": rnd(ks[7], (D, D4)), "b1": rnd(ks[8], (1, D4)),
            "w2_t": rnd(ks[9], (D4, D)), "b2": rnd(ks[10], (1, D)),
        }

    block = jax.jit(residual_attention_block, static_argnames=("n_head",))
    key = jax.random.PRNGKey(0)

    # case 1: tile-aligned shapes; case 2: T not multiple of 8 (pad + key mask)
    cases = [(2, 8, 32, 4), (1, 12, 32, 4)]
    for i, (B, T, D, H) in enumerate(cases):
        kp, kx = jax.random.split(jax.random.fold_in(key, i))
        params = make_params(kp, D)
        x = jax.random.normal(kx, (B, T, D), dtype=jnp.float32)

        prepared = prepare_params(params, H)            # one-time bf16 packing
        out = block(x, prepared, n_head=H)
        out = jax.block_until_ready(out)

        ref = _reference(x, params, H)
        assert out.shape == ref.shape, f"shape mismatch {out.shape} vs {ref.shape}"
        max_err = float(jnp.max(jnp.abs(out - ref)))
        assert jnp.allclose(out, ref, atol=2e-2, rtol=2e-2), \
            f"case {i}: mismatch vs reference (max abs err {max_err})"

    print("KERNEL_OK")
</pallas_src>

<mosaic_0001>
module attributes {stable_mosaic.version = 11 : i64} {
  func.func @_ln_qkv_kernel(%arg0: i32, %arg1: i32, %arg2: memref<1x8x32xf32, #tpu.memory_space<vmem>>, %arg3: memref<1x32xf32, #tpu.memory_space<vmem>>, %arg4: memref<1x32xf32, #tpu.memory_space<vmem>>, %arg5: memref<32x96xbf16, #tpu.memory_space<vmem>>, %arg6: memref<1x96xf32, #tpu.memory_space<vmem>>, %arg7: memref<1x8x32xbf16, #tpu.memory_space<vmem>>, %arg8: memref<1x4x8x8xbf16, #tpu.memory_space<vmem>>, %arg9: memref<1x4x8x8xbf16, #tpu.memory_space<vmem>>) attributes {dimension_semantics = [#tpu.dimension_semantics<parallel>, #tpu.dimension_semantics<parallel>], iteration_bounds = array<i64: 2, 1>, scalar_prefetch = 0 : i64, scratch_operands = 0 : i64, tpu.core_type = #tpu.core_type<tc>, window_params = [{transform_indices = @transform_0, window_bounds = array<i64: 1, 8, 32>}, {pipeline_mode = #tpu.pipeline_mode<synchronous>, transform_indices = @transform_1, window_bounds = array<i64: 1, 32>}, {pipeline_mode = #tpu.pipeline_mode<synchronous>, transform_indices = @transform_2, window_bounds = array<i64: 1, 32>}, {pipeline_mode = #tpu.pipeline_mode<synchronous>, transform_indices = @transform_3, window_bounds = array<i64: 32, 96>}, {pipeline_mode = #tpu.pipeline_mode<synchronous>, transform_indices = @transform_4, window_bounds = array<i64: 1, 96>}, {transform_indices = @transform_5, window_bounds = array<i64: 1, 8, 32>}, {transform_indices = @transform_6, window_bounds = array<i64: 1, 4, 8, 8>}, {transform_indices = @transform_7, window_bounds = array<i64: 1, 4, 8, 8>}]} {
    %c0 = arith.constant 0 : index
    %c0_0 = arith.constant 0 : index
    %c0_1 = arith.constant 0 : index
    %0 = vector.load %arg2[%c0, %c0_0, %c0_1] : memref<1x8x32xf32, #tpu.memory_space<vmem>>, vector<1x8x32xf32>
    %1 = vector.shape_cast %0 : vector<1x8x32xf32> to vector<8x32xf32>
    %c0_2 = arith.constant 0 : index
    %c0_3 = arith.constant 0 : index
    %2 = vector.load %arg3[%c0_2, %c0_3] : memref<1x32xf32, #tpu.memory_space<vmem>>, vector<1x32xf32>
    %3 = vector.shape_cast %2 : vector<1x32xf32> to vector<32xf32>
    %c0_4 = arith.constant 0 : index
    %c0_5 = arith.constant 0 : index
    %4 = vector.load %arg4[%c0_4, %c0_5] : memref<1x32xf32, #tpu.memory_space<vmem>>, vector<1x32xf32>
    %5 = vector.shape_cast %4 : vector<1x32xf32> to vector<32xf32>
    %cst = arith.constant dense<0.000000e+00> : vector<8xf32>
    %6 = vector.multi_reduction <add>, %1, %cst [1] : vector<8x32xf32> to vector<8xf32>
    %7 = vector.shape_cast %6 : vector<8xf32> to vector<8x1xf32>
    %cst_6 = arith.constant 3.200000e+01 : f32
    %8 = vector.broadcast %cst_6 : f32 to vector<8x1xf32>
    %9 = arith.divf %7, %8 : vector<8x1xf32>
    %10 = vector.broadcast %9 : vector<8x1xf32> to vector<8x32xf32>
    %11 = arith.subf %1, %10 : vector<8x32xf32>
    %12 = arith.mulf %11, %11 : vector<8x32xf32>
    %cst_7 = arith.constant dense<0.000000e+00> : vector<8xf32>
    %13 = vector.multi_reduction <add>, %12, %cst_7 [1] : vector<8x32xf32> to vector<8xf32>
    %14 = vector.shape_cast %13 : vector<8xf32> to vector<8x1xf32>
    %cst_8 = arith.constant 3.200000e+01 : f32
    %15 = vector.broadcast %cst_8 : f32 to vector<8x1xf32>
    %16 = arith.divf %14, %15 : vector<8x1xf32>
    %cst_9 = arith.constant 9.99999974E-6 : f32
    %17 = vector.broadcast %cst_9 : f32 to vector<8x1xf32>
    %18 = arith.addf %16, %17 : vector<8x1xf32>
    %19 = math.rsqrt %18 : vector<8x1xf32>
    %20 = vector.shape_cast %3 : vector<32xf32> to vector<1x32xf32>
    %21 = vector.broadcast %19 : vector<8x1xf32> to vector<8x32xf32>
    %22 = vector.broadcast %20 : vector<1x32xf32> to vector<8x32xf32>
    %23 = arith.mulf %21, %22 : vector<8x32xf32>
    %24 = arith.mulf %11, %23 : vector<8x32xf32>
    %25 = vector.shape_cast %5 : vector<32xf32> to vector<1x32xf32>
    %26 = vector.broadcast %25 : vector<1x32xf32> to vector<8x32xf32>
    %27 = arith.addf %24, %26 : vector<8x32xf32>
    %28 = arith.truncf %27 : vector<8x32xf32> to vector<8x32xbf16>
    %c0_10 = arith.constant 0 : index
    %c0_11 = arith.constant 0 : index
    %29 = vector.load %arg5[%c0_10, %c0_11] : memref<32x96xbf16, #tpu.memory_space<vmem>>, vector<32x96xbf16>
    %cst_12 = arith.constant dense<0.000000e+00> : vector<8x96xf32>
    %30 = tpu.matmul %28, %29, %cst_12 {dimension_numbers = #tpu.dot_dimension_numbers<[1], [0], [0], [1], [0, 0, 1, 1], [], []>} : vector<8x32xbf16>, vector<32x96xbf16>, vector<8x96xf32> -> vector<8x96xf32>
    %c0_13 = arith.constant 0 : index
    %c0_14 = arith.constant 0 : index
    %31 = vector.load %arg6[%c0_13, %c0_14] : memref<1x96xf32, #tpu.memory_space<vmem>>, vector<1x96xf32>
    %32 = vector.shape_cast %31 : vector<1x96xf32> to vector<96xf32>
    %33 = vector.shape_cast %32 : vector<96xf32> to vector<1x96xf32>
    %34 = vector.broadcast %33 : vector<1x96xf32> to vector<8x96xf32>
    %35 = arith.addf %30, %34 : vector<8x96xf32>
    %36 = vector.extract_strided_slice %35 {offsets = [0, 0], sizes = [8, 32], strides = [1, 1]} : vector<8x96xf32> to vector<8x32xf32>
    %37 = arith.truncf %36 : vector<8x32xf32> to vector<8x32xbf16>
    %38 = vector.extract_strided_slice %35 {offsets = [0, 32], sizes = [8, 32], strides = [1, 1]} : vector<8x96xf32> to vector<8x32xf32>
    %39 = arith.truncf %38 : vector<8x32xf32> to vector<8x32xbf16>
    %40 = vector.extract_strided_slice %35 {offsets = [0, 64], sizes = [8, 32], strides = [1, 1]} : vector<8x96xf32> to vector<8x32xf32>
    %41 = arith.truncf %40 : vector<8x32xf32> to vector<8x32xbf16>
    %c0_15 = arith.constant 0 : index
    %c0_16 = arith.constant 0 : index
    %c0_17 = arith.constant 0 : index
    %42 = vector.load %arg7[%c0_15, %c0_16, %c0_17] : memref<1x8x32xbf16, #tpu.memory_space<vmem>>, vector<1x8x32xbf16>
    %43 = vector.shape_cast %42 : vector<1x8x32xbf16> to vector<8x32xbf16>
    %44 = vector.shape_cast %37 : vector<8x32xbf16> to vector<1x8x32xbf16>
    tpu.vector_store %arg7[%c0_15, %c0_16, %c0_17], %44 {strides = array<i32>} : memref<1x8x32xbf16, #tpu.memory_space<vmem>>, vector<1x8x32xbf16>,
    %45 = vector.shape_cast %39 : vector<8x32xbf16> to vector<8x4x8xbf16>
    %46 = tpu.transpose %45, [1, 0, 2] : vector<8x4x8xbf16> -> vector<4x8x8xbf16>
    %47 = tpu.transpose %46, [0, 2, 1] : vector<4x8x8xbf16> -> vector<4x8x8xbf16>
    %c0_18 = arith.constant 0 : index
    %c0_19 = arith.constant 0 : index
    %c0_20 = arith.constant 0 : index
    %c0_21 = arith.constant 0 : index
    %48 = vector.load %arg8[%c0_18, %c0_19, %c0_20, %c0_21] : memref<1x4x8x8xbf16, #tpu.memory_space<vmem>>, vector<1x4x8x8xbf16>
    %49 = vector.shape_cast %48 : vector<1x4x8x8xbf16> to vector<4x8x8xbf16>
    %50 = vector.shape_cast %47 : vector<4x8x8xbf16> to vector<1x4x8x8xbf16>
    tpu.vector_store %arg8[%c0_18, %c0_19, %c0_20, %c0_21], %50 {strides = array<i32>} : memref<1x4x8x8xbf16, #tpu.memory_space<vmem>>, vector<1x4x8x8xbf16>,
    %51 = vector.shape_cast %41 : vector<8x32xbf16> to vector<8x4x8xbf16>
    %52 = tpu.transpose %51, [1, 0, 2] : vector<8x4x8xbf16> -> vector<4x8x8xbf16>
    %c0_22 = arith.constant 0 : index
    %c0_23 = arith.constant 0 : index
    %c0_24 = arith.constant 0 : index
    %c0_25 = arith.constant 0 : index
    %53 = vector.load %arg9[%c0_22, %c0_23, %c0_24, %c0_25] : memref<1x4x8x8xbf16, #tpu.memory_space<vmem>>, vector<1x4x8x8xbf16>
    %54 = vector.shape_cast %53 : vector<1x4x8x8xbf16> to vector<4x8x8xbf16>
    %55 = vector.shape_cast %52 : vector<4x8x8xbf16> to vector<1x4x8x8xbf16>
    tpu.vector_store %arg9[%c0_22, %c0_23, %c0_24, %c0_25], %55 {strides = array<i32>} : memref<1x4x8x8xbf16, #tpu.memory_space<vmem>>, vector<1x4x8x8xbf16>,
    return
  }
  func.func @transform_0(%arg0: i32, %arg1: i32) -> (i32, i32, i32) {
    %c0_i32 = arith.constant 0 : i32
    %c0_i32_0 = arith.constant 0 : i32
    return %arg0, %arg1, %c0_i32 : i32, i32, i32
  }
  func.func @transform_1(%arg0: i32, %arg1: i32) -> (i32, i32) {
    %c0_i32 = arith.constant 0 : i32
    %c0_i32_0 = arith.constant 0 : i32
    %c0_i32_1 = arith.constant 0 : i32
    return %c0_i32, %c0_i32_0 : i32, i32
  }
  func.func @transform_2(%arg0: i32, %arg1: i32) -> (i32, i32) {
    %c0_i32 = arith.constant 0 : i32
    %c0_i32_0 = arith.constant 0 : i32
    %c0_i32_1 = arith.constant 0 : i32
    return %c0_i32, %c0_i32_0 : i32, i32
  }
  func.func @transform_3(%arg0: i32, %arg1: i32) -> (i32, i32) {
    %c0_i32 = arith.constant 0 : i32
    %c0_i32_0 = arith.constant 0 : i32
    %c0_i32_1 = arith.constant 0 : i32
    return %c0_i32, %c0_i32_0 : i32, i32
  }
  func.func @transform_4(%arg0: i32, %arg1: i32) -> (i32, i32) {
    %c0_i32 = arith.constant 0 : i32
    %c0_i32_0 = arith.constant 0 : i32
    %c0_i32_1 = arith.constant 0 : i32
    return %c0_i32, %c0_i32_0 : i32, i32
  }
  func.func @transform_5(%arg0: i32, %arg1: i32) -> (i32, i32, i32) {
    %c0_i32 = arith.constant 0 : i32
    %c0_i32_0 = arith.constant 0 : i32
    return %arg0, %arg1, %c0_i32 : i32, i32, i32
  }
  func.func @transform_6(%arg0: i32, %arg1: i32) -> (i32, i32, i32, i32) {
    %c1_i32 = arith.constant 1 : i32
    %0 = arith.muli %arg0, %c1_i32 : i32
    %1 = arith.addi %0, %arg1 : i32
    %c0_i32 = arith.constant 0 : i32
    %c0_i32_0 = arith.constant 0 : i32
    %c0_i32_1 = arith.constant 0 : i32
    %c0_i32_2 = arith.constant 0 : i32
    return %1, %c0_i32, %c0_i32_0, %c0_i32_1 : i32, i32, i32, i32
  }
  func.func @transform_7(%arg0: i32, %arg1: i32) -> (i32, i32, i32, i32) {
    %c1_i32 = arith.constant 1 : i32
    %0 = arith.muli %arg0, %c1_i32 : i32
    %1 = arith.addi %0, %arg1 : i32
    %c0_i32 = arith.constant 0 : i32
    %c0_i32_0 = arith.constant 0 : i32
    %c0_i32_1 = arith.constant 0 : i32
    %c0_i32_2 = arith.constant 0 : i32
    return %1, %c0_i32, %c0_i32_0, %c0_i32_1 : i32, i32, i32, i32
  }
}

module attributes {stable_mosaic.version = 11 : i64} {
  func.func @_attn_kernel(%arg0: i32, %arg1: i32, %arg2: memref<1x8x32xbf16, #tpu.memory_space<vmem>>, %arg3: memref<1x4x8x8xbf16, #tpu.memory_space<vmem>>, %arg4: memref<1x4x8x8xbf16, #tpu.memory_space<vmem>>, %arg5: memref<1x8x32xbf16, #tpu.memory_space<vmem>>) attributes {dimension_semantics = [#tpu.dimension_semantics<parallel>, #tpu.dimension_semantics<parallel>], iteration_bounds = array<i64: 2, 1>, scalar_prefetch = 0 : i64, scratch_operands = 0 : i64, tpu.core_type = #tpu.core_type<tc>, window_params = [{transform_indices = @transform_0, window_bounds = array<i64: 1, 8, 32>}, {transform_indices = @transform_1, window_bounds = array<i64: 1, 4, 8, 8>}, {transform_indices = @transform_2, window_bounds = array<i64: 1, 4, 8, 8>}, {transform_indices = @transform_3, window_bounds = array<i64: 1, 8, 32>}]} {
    %c0 = arith.constant 0 : index
    %c0_0 = arith.constant 0 : index
    %c0_1 = arith.constant 0 : index
    %0 = vector.load %arg2[%c0, %c0_0, %c0_1] : memref<1x8x32xbf16, #tpu.memory_space<vmem>>, vector<1x8x32xbf16>
    %1 = vector.shape_cast %0 : vector<1x8x32xbf16> to vector<8x32xbf16>
    %2 = vector.shape_cast %1 : vector<8x32xbf16> to vector<8x4x8xbf16>
    %3 = tpu.transpose %2, [1, 0, 2] : vector<8x4x8xbf16> -> vector<4x8x8xbf16>
    %cst = arith.constant -1.000000e+30 : f32
    %4 = vector.broadcast %cst : f32 to vector<4x8x1xf32>
    %cst_2 = arith.constant 0.000000e+00 : f32
    %5 = vector.broadcast %cst_2 : f32 to vector<4x8x1xf32>
    %cst_3 = arith.constant 0.000000e+00 : f32
    %6 = vector.broadcast %cst_3 : f32 to vector<4x8x8xf32>
    %c0_i32 = arith.constant 0 : i32
    %7 = arith.index_cast %c0_i32 : i32 to index
    %c0_4 = arith.constant 0 : index
    %c0_5 = arith.constant 0 : index
    %c0_6 = arith.constant 0 : index
    %8 = vector.load %arg3[%7, %c0_4, %c0_5, %c0_6] : memref<1x4x8x8xbf16, #tpu.memory_space<vmem>>, vector<1x4x8x8xbf16>
    %9 = vector.shape_cast %8 : vector<1x4x8x8xbf16> to vector<4x8x8xbf16>
    %10 = arith.index_cast %c0_i32 : i32 to index
    %c0_7 = arith.constant 0 : index
    %c0_8 = arith.constant 0 : index
    %c0_9 = arith.constant 0 : index
    %11 = vector.load %arg4[%10, %c0_7, %c0_8, %c0_9] : memref<1x4x8x8xbf16, #tpu.memory_space<vmem>>, vector<1x4x8x8xbf16>
    %12 = vector.shape_cast %11 : vector<1x4x8x8xbf16> to vector<4x8x8xbf16>
    "tpu.trace_start"() <{level = 10 : i32, message = "hqd,hdk->hqk"}> : () -> ()
    %cst_10 = arith.constant dense<0.000000e+00> : vector<4x8x8xf32>
    %13 = tpu.matmul %3, %9, %cst_10 {dimension_numbers = #tpu.dot_dimension_numbers<[2], [1], [1], [2], [0, 0, 0, 1, 1, 2], [0], [0]>} : vector<4x8x8xbf16>, vector<4x8x8xbf16>, vector<4x8x8xf32> -> vector<4x8x8xf32>
    "tpu.trace_stop"() : () -> ()
    %cst_11 = arith.constant dense<0xFF800000> : vector<4x8xf32>
    %14 = vector.multi_reduction <maximumf>, %13, %cst_11 [2] : vector<4x8x8xf32> to vector<4x8xf32>
    %15 = vector.shape_cast %14 : vector<4x8xf32> to vector<4x8x1xf32>
    %16 = arith.maximumf %4, %15 : vector<4x8x1xf32>
    %17 = arith.subf %4, %16 : vector<4x8x1xf32>
    %18 = math.exp %17 : vector<4x8x1xf32>
    %19 = vector.broadcast %16 : vector<4x8x1xf32> to vector<4x8x8xf32>
    %20 = arith.subf %13, %19 : vector<4x8x8xf32>
    %21 = math.exp %20 : vector<4x8x8xf32>
    %22 = arith.mulf %18, %5 : vector<4x8x1xf32>
    %cst_12 = arith.constant dense<0.000000e+00> : vector<4x8xf32>
    %23 = vector.multi_reduction <add>, %21, %cst_12 [2] : vector<4x8x8xf32> to vector<4x8xf32>
    %24 = vector.shape_cast %23 : vector<4x8xf32> to vector<4x8x1xf32>
    %25 = arith.addf %22, %24 : vector<4x8x1xf32>
    %26 = vector.broadcast %18 : vector<4x8x1xf32> to vector<4x8x8xf32>
    %27 = arith.mulf %26, %6 : vector<4x8x8xf32>
    %28 = arith.truncf %21 : vector<4x8x8xf32> to vector<4x8x8xbf16>
    "tpu.trace_start"() <{level = 10 : i32, message = "hqk,hkd->hqd"}> : () -> ()
    %cst_13 = arith.constant dense<0.000000e+00> : vector<4x8x8xf32>
    %29 = tpu.matmul %28, %12, %cst_13 {dimension_numbers = #tpu.dot_dimension_numbers<[2], [1], [1], [2], [0, 0, 0, 1, 1, 2], [0], [0]>} : vector<4x8x8xbf16>, vector<4x8x8xbf16>, vector<4x8x8xf32> -> vector<4x8x8xf32>
    "tpu.trace_stop"() : () -> ()
    %30 = arith.addf %27, %29 : vector<4x8x8xf32>
    %c1_i32 = arith.constant 1 : i32
    %31 = tpu.reciprocal %25 {approx = true} : vector<4x8x1xf32> -> vector<4x8x1xf32>
    %32 = vector.broadcast %31 : vector<4x8x1xf32> to vector<4x8x8xf32>
    %33 = arith.mulf %30, %32 : vector<4x8x8xf32>
    %34 = tpu.transpose %33, [1, 0, 2] : vector<4x8x8xf32> -> vector<8x4x8xf32>
    %35 = vector.shape_cast %34 : vector<8x4x8xf32> to vector<8x32xf32>
    %36 = arith.truncf %35 : vector<8x32xf32> to vector<8x32xbf16>
    %c0_14 = arith.constant 0 : index
    %c0_15 = arith.constant 0 : index
    %c0_16 = arith.constant 0 : index
    %37 = vector.load %arg5[%c0_14, %c0_15, %c0_16] : memref<1x8x32xbf16, #tpu.memory_space<vmem>>, vector<1x8x32xbf16>
    %38 = vector.shape_cast %37 : vector<1x8x32xbf16> to vector<8x32xbf16>
    %39 = vector.shape_cast %36 : vector<8x32xbf16> to vector<1x8x32xbf16>
    tpu.vector_store %arg5[%c0_14, %c0_15, %c0_16], %39 {strides = array<i32>} : memref<1x8x32xbf16, #tpu.memory_space<vmem>>, vector<1x8x32xbf16>,
    return
  }
  func.func @transform_0(%arg0: i32, %arg1: i32) -> (i32, i32, i32) {
    %c0_i32 = arith.constant 0 : i32
    %c0_i32_0 = arith.constant 0 : i32
    return %arg0, %arg1, %c0_i32 : i32, i32, i32
  }
  func.func @transform_1(%arg0: i32, %arg1: i32) -> (i32, i32, i32, i32) {
    %c0_i32 = arith.constant 0 : i32
    %c0_i32_0 = arith.constant 0 : i32
    %c0_i32_1 = arith.constant 0 : i32
    %c0_i32_2 = arith.constant 0 : i32
    return %arg0, %c0_i32, %c0_i32_0, %c0_i32_1 : i32, i32, i32, i32
  }
  func.func @transform_2(%arg0: i32, %arg1: i32) -> (i32, i32, i32, i32) {
    %c0_i32 = arith.constant 0 : i32
    %c0_i32_0 = arith.constant 0 : i32
    %c0_i32_1 = arith.constant 0 : i32
    %c0_i32_2 = arith.constant 0 : i32
    return %arg0, %c0_i32, %c0_i32_0, %c0_i32_1 : i32, i32, i32, i32
  }
  func.func @transform_3(%arg0: i32, %arg1: i32) -> (i32, i32, i32) {
    %c0_i32 = arith.constant 0 : i32
    %c0_i32_0 = arith.constant 0 : i32
    return %arg0, %arg1, %c0_i32 : i32, i32, i32
  }
}

module attributes {stable_mosaic.version = 11 : i64} {
  func.func @_out_mlp_kernel(%arg0: i32, %arg1: i32, %arg2: memref<16x32xf32, #tpu.memory_space<vmem>>, %arg3: memref<16x32xbf16, #tpu.memory_space<vmem>>, %arg4: memref<32x32xbf16, #tpu.memory_space<vmem>>, %arg5: memref<1x32xf32, #tpu.memory_space<vmem>>, %arg6: memref<1x32xf32, #tpu.memory_space<vmem>>, %arg7: memref<1x32xf32, #tpu.memory_space<vmem>>, %arg8: memref<32x128xbf16, #tpu.memory_space<vmem>>, %arg9: memref<1x128xf32, #tpu.memory_space<vmem>>, %arg10: memref<128x32xbf16, #tpu.memory_space<vmem>>, %arg11: memref<1x32xf32, #tpu.memory_space<vmem>>, %arg12: memref<16x32xf32, #tpu.memory_space<vmem>>, %arg13: memref<16x32xf32, #tpu.memory_space<vmem>>, %arg14: memref<16x32xbf16, #tpu.memory_space<vmem>>, %arg15: memref<16x32xf32, #tpu.memory_space<vmem>>) attributes {dimension_semantics = [#tpu.dimension_semantics<parallel>, #tpu.dimension_semantics<arbitrary>], iteration_bounds = array<i64: 1, 1>, scalar_prefetch = 0 : i64, scratch_operands = 3 : i64, tpu.core_type = #tpu.core_type<tc>, window_params = [{transform_indices = @transform_0, window_bounds = array<i64: 16, 32>}, {transform_indices = @transform_1, window_bounds = array<i64: 16, 32>}, {pipeline_mode = #tpu.pipeline_mode<synchronous>, transform_indices = @transform_2, window_bounds = array<i64: 32, 32>}, {pipeline_mode = #tpu.pipeline_mode<synchronous>, transform_indices = @transform_3, window_bounds = array<i64: 1, 32>}, {pipeline_mode = #tpu.pipeline_mode<synchronous>, transform_indices = @transform_4, window_bounds = array<i64: 1, 32>}, {pipeline_mode = #tpu.pipeline_mode<synchronous>, transform_indices = @transform_5, window_bounds = array<i64: 1, 32>}, {transform_indices = @transform_6, window_bounds = array<i64: 32, 128>}, {transform_indices = @transform_7, window_bounds = array<i64: 1, 128>}, {transform_indices = @transform_8, window_bounds = array<i64: 128, 32>}, {pipeline_mode = #tpu.pipeline_mode<synchronous>, transform_indices = @transform_9, window_bounds = array<i64: 1, 32>}, {transform_indices = @transform_10, window_bounds = array<i64: 16, 32>}]} {
    %c0_i32 = arith.constant 0 : i32
    %0 = arith.cmpi eq, %arg1, %c0_i32 : i32
    %1 = arith.extui %0 : i1 to i32
    %c0_i32_0 = arith.constant 0 : i32
    %2 = arith.cmpi ne, %1, %c0_i32_0 : i32
    scf.if %2 {
      %c0_18 = arith.constant 0 : index
      %c0_19 = arith.constant 0 : index
      %28 = vector.load %arg3[%c0_18, %c0_19] : memref<16x32xbf16, #tpu.memory_space<vmem>>, vector<16x32xbf16>
      %c0_20 = arith.constant 0 : index
      %c0_21 = arith.constant 0 : index
      %29 = vector.load %arg4[%c0_20, %c0_21] : memref<32x32xbf16, #tpu.memory_space<vmem>>, vector<32x32xbf16>
      %cst_22 = arith.constant dense<0.000000e+00> : vector<16x32xf32>
      %30 = tpu.matmul %28, %29, %cst_22 {dimension_numbers = #tpu.dot_dimension_numbers<[1], [0], [0], [1], [0, 0, 1, 1], [], []>} : vector<16x32xbf16>, vector<32x32xbf16>, vector<16x32xf32> -> vector<16x32xf32>
      %c0_23 = arith.constant 0 : index
      %c0_24 = arith.constant 0 : index
      %31 = vector.load %arg5[%c0_23, %c0_24] : memref<1x32xf32, #tpu.memory_space<vmem>>, vector<1x32xf32>
      %32 = vector.shape_cast %31 : vector<1x32xf32> to vector<32xf32>
      %33 = vector.shape_cast %32 : vector<32xf32> to vector<1x32xf32>
      %34 = vector.broadcast %33 : vector<1x32xf32> to vector<16x32xf32>
      %35 = arith.addf %30, %34 : vector<16x32xf32>
      %c0_25 = arith.constant 0 : index
      %c0_26 = arith.constant 0 : index
      %36 = vector.load %arg2[%c0_25, %c0_26] : memref<16x32xf32, #tpu.memory_space<vmem>>, vector<16x32xf32>
      %37 = arith.addf %36, %35 : vector<16x32xf32>
      %c0_27 = arith.constant 0 : index
      %c0_28 = arith.constant 0 : index
      %38 = vector.load %arg13[%c0_27, %c0_28] : memref<16x32xf32, #tpu.memory_space<vmem>>, vector<16x32xf32>
      tpu.vector_store %arg13[%c0_27, %c0_28], %37 {strides = array<i32>} : memref<16x32xf32, #tpu.memory_space<vmem>>, vector<16x32xf32>,
      %c0_29 = arith.constant 0 : index
      %c0_30 = arith.constant 0 : index
      %39 = vector.load %arg6[%c0_29, %c0_30] : memref<1x32xf32, #tpu.memory_space<vmem>>, vector<1x32xf32>
      %40 = vector.shape_cast %39 : vector<1x32xf32> to vector<32xf32>
      %c0_31 = arith.constant 0 : index
      %c0_32 = arith.constant 0 : index
      %41 = vector.load %arg7[%c0_31, %c0_32] : memref<1x32xf32, #tpu.memory_space<vmem>>, vector<1x32xf32>
      %42 = vector.shape_cast %41 : vector<1x32xf32> to vector<32xf32>
      %cst_33 = arith.constant dense<0.000000e+00> : vector<16xf32>
      %43 = vector.multi_reduction <add>, %37, %cst_33 [1] : vector<16x32xf32> to vector<16xf32>
      %44 = vector.shape_cast %43 : vector<16xf32> to vector<16x1xf32>
      %cst_34 = arith.constant 3.200000e+01 : f32
      %45 = vector.broadcast %cst_34 : f32 to vector<16x1xf32>
      %46 = arith.divf %44, %45 : vector<16x1xf32>
      %47 = vector.broadcast %46 : vector<16x1xf32> to vector<16x32xf32>
      %48 = arith.subf %37, %47 : vector<16x32xf32>
      %49 = arith.mulf %48, %48 : vector<16x32xf32>
      %cst_35 = arith.constant dense<0.000000e+00> : vector<16xf32>
      %50 = vector.multi_reduction <add>, %49, %cst_35 [1] : vector<16x32xf32> to vector<16xf32>
      %51 = vector.shape_cast %50 : vector<16xf32> to vector<16x1xf32>
      %cst_36 = arith.constant 3.200000e+01 : f32
      %52 = vector.broadcast %cst_36 : f32 to vector<16x1xf32>
      %53 = arith.divf %51, %52 : vector<16x1xf32>
      %cst_37 = arith.constant 9.99999974E-6 : f32
      %54 = vector.broadcast %cst_37 : f32 to vector<16x1xf32>
      %55 = arith.addf %53, %54 : vector<16x1xf32>
      %56 = math.rsqrt %55 : vector<16x1xf32>
      %57 = vector.shape_cast %40 : vector<32xf32> to vector<1x32xf32>
      %58 = vector.broadcast %56 : vector<16x1xf32> to vector<16x32xf32>
      %59 = vector.broadcast %57 : vector<1x32xf32> to vector<16x32xf32>
      %60 = arith.mulf %58, %59 : vector<16x32xf32>
      %61 = arith.mulf %48, %60 : vector<16x32xf32>
      %62 = vector.shape_cast %42 : vector<32xf32> to vector<1x32xf32>
      %63 = vector.broadcast %62 : vector<1x32xf32> to vector<16x32xf32>
      %64 = arith.addf %61, %63 : vector<16x32xf32>
      %65 = arith.truncf %64 : vector<16x32xf32> to vector<16x32xbf16>
      %c0_38 = arith.constant 0 : index
      %c0_39 = arith.constant 0 : index
      %66 = vector.load %arg14[%c0_38, %c0_39] : memref<16x32xbf16, #tpu.memory_space<vmem>>, vector<16x32xbf16>
      tpu.vector_store %arg14[%c0_38, %c0_39], %65 {strides = array<i32>} : memref<16x32xbf16, #tpu.memory_space<vmem>>, vector<16x32xbf16>,
      %cst_40 = arith.constant 0.000000e+00 : f32
      %67 = vector.broadcast %cst_40 : f32 to vector<16x32xf32>
      %c0_41 = arith.constant 0 : index
      %c0_42 = arith.constant 0 : index
      %68 = vector.load %arg15[%c0_41, %c0_42] : memref<16x32xf32, #tpu.memory_space<vmem>>, vector<16x32xf32>
      tpu.vector_store %arg15[%c0_41, %c0_42], %67 {strides = array<i32>} : memref<16x32xf32, #tpu.memory_space<vmem>>, vector<16x32xf32>,
    } else {
    }
    %c0 = arith.constant 0 : index
    %c0_1 = arith.constant 0 : index
    %3 = vector.load %arg14[%c0, %c0_1] : memref<16x32xbf16, #tpu.memory_space<vmem>>, vector<16x32xbf16>
    %c0_2 = arith.constant 0 : index
    %c0_3 = arith.constant 0 : index
    %4 = vector.load %arg8[%c0_2, %c0_3] : memref<32x128xbf16, #tpu.memory_space<vmem>>, vector<32x128xbf16>
    %cst = arith.constant dense<0.000000e+00> : vector<16x128xf32>
    %5 = tpu.matmul %3, %4, %cst {dimension_numbers = #tpu.dot_dimension_numbers<[1], [0], [0], [1], [0, 0, 1, 1], [], []>} : vector<16x32xbf16>, vector<32x128xbf16>, vector<16x128xf32> -> vector<16x128xf32>
    %c0_4 = arith.constant 0 : index
    %c0_5 = arith.constant 0 : index
    %6 = vector.load %arg9[%c0_4, %c0_5] : memref<1x128xf32, #tpu.memory_space<vmem>>, vector<1x128xf32>
    %7 = vector.shape_cast %6 : vector<1x128xf32> to vector<128xf32>
    %8 = vector.shape_cast %7 : vector<128xf32> to vector<1x128xf32>
    %9 = vector.broadcast %8 : vector<1x128xf32> to vector<16x128xf32>
    %10 = arith.addf %5, %9 : vector<16x128xf32>
    %cst_6 = arith.constant 5.000000e-01 : f32
    %11 = vector.broadcast %cst_6 : f32 to vector<16x128xf32>
    %12 = arith.mulf %11, %10 : vector<16x128xf32>
    %cst_7 = arith.constant 0.707106769 : f32
    %13 = vector.broadcast %cst_7 : f32 to vector<16x128xf32>
    %14 = arith.mulf %10, %13 : vector<16x128xf32>
    %15 = math.erf %14 : vector<16x128xf32>
    %cst_8 = arith.constant 1.000000e+00 : f32
    %16 = vector.broadcast %cst_8 : f32 to vector<16x128xf32>
    %17 = arith.addf %16, %15 : vector<16x128xf32>
    %18 = arith.mulf %12, %17 : vector<16x128xf32>
    %c0_9 = arith.constant 0 : index
    %c0_10 = arith.constant 0 : index
    %19 = vector.load %arg15[%c0_9, %c0_10] : memref<16x32xf32, #tpu.memory_space<vmem>>, vector<16x32xf32>
    %20 = arith.truncf %18 : vector<16x128xf32> to vector<16x128xbf16>
    %c0_11 = arith.constant 0 : index
    %c0_12 = arith.constant 0 : index
    %21 = vector.load %arg10[%c0_11, %c0_12] : memref<128x32xbf16, #tpu.memory_space<vmem>>, vector<128x32xbf16>
    %cst_13 = arith.constant dense<0.000000e+00> : vector<16x32xf32>
    %22 = tpu.matmul %20, %21, %cst_13 {dimension_numbers = #tpu.dot_dimension_numbers<[1], [0], [0], [1], [0, 0, 1, 1], [], []>} : vector<16x128xbf16>, vector<128x32xbf16>, vector<16x32xf32> -> vector<16x32xf32>
    %23 = arith.addf %19, %22 : vector<16x32xf32>
    %c0_14 = arith.constant 0 : index
    %c0_15 = arith.constant 0 : index
    %24 = vector.load %arg15[%c0_14, %c0_15] : memref<16x32xf32, #tpu.memory_space<vmem>>, vector<16x32xf32>
    tpu.vector_store %arg15[%c0_14, %c0_15], %23 {strides = array<i32>} : memref<16x32xf32, #tpu.memory_space<vmem>>, vector<16x32xf32>,
    %c0_i32_16 = arith.constant 0 : i32
    %25 = arith.cmpi eq, %arg1, %c0_i32_16 : i32
    %26 = arith.extui %25 : i1 to i32
    %c0_i32_17 = arith.constant 0 : i32
    %27 = arith.cmpi ne, %26, %c0_i32_17 : i32
    scf.if %27 {
      %c0_18 = arith.constant 0 : index
      %c0_19 = arith.constant 0 : index
      %28 = vector.load %arg13[%c0_18, %c0_19] : memref<16x32xf32, #tpu.memory_space<vmem>>, vector<16x32xf32>
      %c0_20 = arith.constant 0 : index
      %c0_21 = arith.constant 0 : index
      %29 = vector.load %arg15[%c0_20, %c0_21] : memref<16x32xf32, #tpu.memory_space<vmem>>, vector<16x32xf32>
      %30 = arith.addf %28, %29 : vector<16x32xf32>
      %c0_22 = arith.constant 0 : index
      %c0_23 = arith.constant 0 : index
      %31 = vector.load %arg11[%c0_22, %c0_23] : memref<1x32xf32, #tpu.memory_space<vmem>>, vector<1x32xf32>
      %32 = vector.shape_cast %31 : vector<1x32xf32> to vector<32xf32>
      %33 = vector.shape_cast %32 : vector<32xf32> to vector<1x32xf32>
      %34 = vector.broadcast %33 : vector<1x32xf32> to vector<16x32xf32>
      %35 = arith.addf %30, %34 : vector<16x32xf32>
      %c0_24 = arith.constant 0 : index
      %c0_25 = arith.constant 0 : index
      %36 = vector.load %arg12[%c0_24, %c0_25] : memref<16x32xf32, #tpu.memory_space<vmem>>, vector<16x32xf32>
      tpu.vector_store %arg12[%c0_24, %c0_25], %35 {strides = array<i32>} : memref<16x32xf32, #tpu.memory_space<vmem>>, vector<16x32xf32>,
    } else {
    }
    return
  }
  func.func @transform_0(%arg0: i32, %arg1: i32) -> (i32, i32) {
    %c0_i32 = arith.constant 0 : i32
    %c0_i32_0 = arith.constant 0 : i32
    return %arg0, %c0_i32 : i32, i32
  }
  func.func @transform_1(%arg0: i32, %arg1: i32) -> (i32, i32) {
    %c0_i32 = arith.constant 0 : i32
    %c0_i32_0 = arith.constant 0 : i32
    return %arg0, %c0_i32 : i32, i32
  }
  func.func @transform_2(%arg0: i32, %arg1: i32) -> (i32, i32) {
    %c0_i32 = arith.constant 0 : i32
    %c0_i32_0 = arith.constant 0 : i32
    %c0_i32_1 = arith.constant 0 : i32
    return %c0_i32, %c0_i32_0 : i32, i32
  }
  func.func @transform_3(%arg0: i32, %arg1: i32) -> (i32, i32) {
    %c0_i32 = arith.constant 0 : i32
    %c0_i32_0 = arith.constant 0 : i32
    %c0_i32_1 = arith.constant 0 : i32
    return %c0_i32, %c0_i32_0 : i32, i32
  }
  func.func @transform_4(%arg0: i32, %arg1: i32) -> (i32, i32) {
    %c0_i32 = arith.constant 0 : i32
    %c0_i32_0 = arith.constant 0 : i32
    %c0_i32_1 = arith.constant 0 : i32
    return %c0_i32, %c0_i32_0 : i32, i32
  }
  func.func @transform_5(%arg0: i32, %arg1: i32) -> (i32, i32) {
    %c0_i32 = arith.constant 0 : i32
    %c0_i32_0 = arith.constant 0 : i32
    %c0_i32_1 = arith.constant 0 : i32
    return %c0_i32, %c0_i32_0 : i32, i32
  }
  func.func @transform_6(%arg0: i32, %arg1: i32) -> (i32, i32) {
    %c0_i32 = arith.constant 0 : i32
    %c0_i32_0 = arith.constant 0 : i32
    return %c0_i32, %arg1 : i32, i32
  }
  func.func @transform_7(%arg0: i32, %arg1: i32) -> (i32, i32) {
    %c0_i32 = arith.constant 0 : i32
    %c0_i32_0 = arith.constant 0 : i32
    return %c0_i32, %arg1 : i32, i32
  }
  func.func @transform_8(%arg0: i32, %arg1: i32) -> (i32, i32) {
    %c0_i32 = arith.constant 0 : i32
    %c0_i32_0 = arith.constant 0 : i32
    return %arg1, %c0_i32 : i32, i32
  }
  func.func @transform_9(%arg0: i32, %arg1: i32) -> (i32, i32) {
    %c0_i32 = arith.constant 0 : i32
    %c0_i32_0 = arith.constant 0 : i32
    %c0_i32_1 = arith.constant 0 : i32
    return %c0_i32, %c0_i32_0 : i32, i32
  }
  func.func @transform_10(%arg0: i32, %arg1: i32) -> (i32, i32) {
    %c0_i32 = arith.constant 0 : i32
    %c0_i32_0 = arith.constant 0 : i32
    return %arg0, %c0_i32 : i32, i32
  }
}

</mosaic_0001>

<llo_original>
// kernel: residual_attention_block.5
$region0: #{residual_attention_block.5}
  #allocation0 [shape = 'u32[]', space=smem, size = 0x4, offset = 0x4, fixed_abs, tag = 'smem constant byte address 0x4 - core index']
  #allocation1 [shape = 'u32[144,128]{1,0:T(1,128)}', space=vmem, size = 0x12000, scoped, tag = 'internal scratch']
  #allocation2 [shape = 'f32[16,32]{1,0:T(8,128)}', space=vmem, size = 0x2000, scoped, tag = 'scratch operand']
  #allocation3 [shape = 'bf16[16,32]{1,0:T(16,128)(2,1)}', space=vmem, size = 0x1000, scoped, tag = 'scratch operand']
  #allocation4 [shape = 'f32[16,32]{1,0:T(8,128)}', space=vmem, size = 0x2000, scoped, tag = 'scratch operand']
  %s0 = inlined_call_operand.vmem [shape: f32[16,32], index: 0, kind: input, shape index: {}]
  %s1 = inlined_call_operand.vmem [shape: bf16[16,32], index: 1, kind: input, shape index: {}]
  %s2 = inlined_call_operand.vmem [shape: bf16[32,32], index: 2, kind: input, shape index: {}]
  %s3 = inlined_call_operand.vmem [shape: f32[1,32], index: 3, kind: input, shape index: {}]
  %s4 = inlined_call_operand.vmem [shape: f32[1,32], index: 4, kind: input, shape index: {}]
  %s5 = inlined_call_operand.vmem [shape: f32[1,32], index: 5, kind: input, shape index: {}]
  %s6 = inlined_call_operand.vmem [shape: bf16[32,128], index: 6, kind: input, shape index: {}]
  %s7 = inlined_call_operand.vmem [shape: f32[1,128], index: 7, kind: input, shape index: {}]
  %s8 = inlined_call_operand.vmem [shape: bf16[128,32], index: 8, kind: input, shape index: {}]
  %s9 = inlined_call_operand.vmem [shape: f32[1,32], index: 9, kind: input, shape index: {}]
  %s10 = inlined_call_operand.hbm [shape: f32[16,32], index: 10, kind: output, shape index: {}]
  %s11 = sld [smem:[#allocation0]]
  $region58: #{residual_attention_block.5} parent=0
    _
  %s13 = ssub.s32 1, %s11
  %s14 = scalar_select 0, %s13, %s11
  $region1: #{residual_attention_block.5} parent=0
    #allocation5 [shape = 'u8[8192]{0}', space=vmem, size = 0x2000, scoped, tag = 'output window, operand 0, single buffered']
    #allocation6 [shape = 's32[1]{0}', space=sflag, size = 0x4, scoped, tag = 'scoped memory for residual_attention_block.5']
    %15 = vsyncpa [#allocation6], 0
    // Predicated region
    $region2: #{residual_attention_block.5} parent=1 // pred_check
      _
    $region3: #{residual_attention_block.5} parent=1 // pred_check_branch
      %17 = sbr.rel (0) target = $region5
    $region4: #{residual_attention_block.5} parent=1 // pred_region
      _
    $region5: #{residual_attention_block.5} parent=1 // pred_fallthru
      _
    // Predicated region
    $region6: #{residual_attention_block.5} parent=1 // pred_check
      _
    $region7: #{residual_attention_block.5} parent=1 // pred_check_branch
      %19 = sbr.rel (0) target = $region9
    $region8: #{residual_attention_block.5} parent=1 // pred_region
      _
    $region9: #{residual_attention_block.5} parent=1 // pred_fallthru
      _
    // Predicated region
    $region10: #{residual_attention_block.5} parent=1 // pred_check
      _
    $region11: #{residual_attention_block.5} parent=1 // pred_check_branch
      %21 = sbr.rel (0) target = $region13
    $region12: #{residual_attention_block.5} parent=1 // pred_region
      _
    $region13: #{residual_attention_block.5} parent=1 // pred_fallthru
      _
    // Predicated region
    $region14: #{residual_attention_block.5} parent=1 // pred_check
      _
    $region15: #{residual_attention_block.5} parent=1 // pred_check_branch
      %23 = sbr.rel (0) target = $region17
    $region16: #{residual_attention_block.5} parent=1 // pred_region
      _
    $region17: #{residual_attention_block.5} parent=1 // pred_fallthru
      _
    // Predicated region
    $region18: #{residual_attention_block.5} parent=1 // pred_check
      _
    $region19: #{residual_attention_block.5} parent=1 // pred_check_branch
      %25 = sbr.rel (0) target = $region21
    $region20: #{residual_attention_block.5} parent=1 // pred_region
      _
    $region21: #{residual_attention_block.5} parent=1 // pred_fallthru
      _
    // Predicated region
    $region22: #{residual_attention_block.5} parent=1 // pred_check
      _
    $region23: #{residual_attention_block.5} parent=1 // pred_check_branch
      %27 = sbr.rel (0) target = $region25
    $region24: #{residual_attention_block.5} parent=1 // pred_region
      _
    $region25: #{residual_attention_block.5} parent=1 // pred_fallthru
      _
    // Predicated region
    $region26: #{residual_attention_block.5} parent=1 // pred_check
      _
    $region27: #{residual_attention_block.5} parent=1 // pred_check_branch
      %29 = sbr.rel (0) target = $region29
    $region28: #{residual_attention_block.5} parent=1 // pred_region
      _
    $region29: #{residual_attention_block.5} parent=1 // pred_fallthru
      _
    // Predicated region
    $region30: #{residual_attention_block.5} parent=1 // pred_check
      _
    $region31: #{residual_attention_block.5} parent=1 // pred_check_branch
      %31 = sbr.rel (0) target = $region33
    $region32: #{residual_attention_block.5} parent=1 // pred_region
      _
    $region33: #{residual_attention_block.5} parent=1 // pred_fallthru
      _
    // Predicated region
    $region34: #{residual_attention_block.5} parent=1 // pred_check
      _
    $region35: #{residual_attention_block.5} parent=1 // pred_check_branch
      %33 = sbr.rel (0) target = $region37
    $region36: #{residual_attention_block.5} parent=1 // pred_region
      _
    $region37: #{residual_attention_block.5} parent=1 // pred_fallthru
      _
    // Predicated region
    $region38: #{residual_attention_block.5} parent=1 // pred_check
      _
    $region39: #{residual_attention_block.5} parent=1 // pred_check_branch
      %35 = sbr.rel (0) target = $region41
    $region40: #{residual_attention_block.5} parent=1 // pred_region
      _
    $region41: #{residual_attention_block.5} parent=1 // pred_fallthru
      _
    %p37 = scmp.eq.s32.totalorder 0, 0
    // Predicated region
    $region42: #{residual_attention_block.5} parent=1 // pred_check
      %p38 = pneg %p37
    $region43: #{residual_attention_block.5} parent=1 // pred_check_branch
      %40 = sbr.rel (%p38) target = $region45
    $region44: #{residual_attention_block.5} parent=1 // pred_region
      %v41 = vld [vmem:[%s1] sm:$0xf]
      %v42 = vld [vmem:[%s1 + $0x4] sm:$0xf]
      %v43 = vld [vmem:[%s2] sm:$0xf]
      %v44 = vld [vmem:[%s2 + $0x4] sm:$0xf]
      %v45 = vld [vmem:[%s2 + $0x8] sm:$0xf]
      %v46 = vld [vmem:[%s2 + $0xc] sm:$0xf]
      %v47 = vld [vmem:[%s3] sm:$0x1]
      %v49 = vlaneseq
      %v50 = vshrl.u32 %v49, 7
      %v51 = vsub.s32 0, %v50
      %v52 = vrot.slane %v47, %v51
      %v56 = vunpack.c.l.b16 %v41
      %v57 = vunpack.c.l.b16 %v42
      %v58 = vpack.c.b16 %v57, %v56
      %v63 = vunpack.c.l.b16 %v43
      %v64 = vunpack.c.l.b16 %v44
      %v65 = vunpack.c.l.b16 %v45
      %v66 = vunpack.c.l.b16 %v46
      %v67 = vpack.c.b16 %v64, %v63
      %v68 = vpack.c.b16 %v66, %v65
      %vm71 = vcmask 261120
      %v73 = vsel %vm71, %v58, 0
      %75 = vmatprep.subr.bf16.mxu0 0
      %76 = vmatpush1.bf16.msra.mxu0 %v67
      %77 = vmatprep.subr.bf16.mxu0 0
      %78 = vmatpush1.bf16.msra.mxu0 %v68
      %79 = vmatprep.subr.bf16.mxu0 0
      %80 = vmatpush1.bf16.msra.mxu0 0
      %81 = vmatprep.subr.bf16.mxu0 0
      %82 = vmatpush1.bf16.msra.mxu0 0
      %83 = vmatprep.subr.bf16.mxu0 0
      %84 = vmatpush1.bf16.msra.mxu0 0
      %85 = vmatprep.subr.bf16.mxu0 0
      %86 = vmatpush1.bf16.msra.mxu0 0
      %87 = vmatprep.subr.bf16.mxu0 0
      %88 = vmatpush1.bf16.msra.mxu0 0
      %89 = vmatprep.subr.bf16.mxu0 0
      %90 = vmatpush1.bf16.msra.mxu0 0
      %91 = vmatprep.subr.bf16.mxu0 0
      %92 = vmatpush1.bf16.msra.mxu0 0
      %93 = vmatprep.subr.bf16.mxu0 0
      %94 = vmatpush1.bf16.msra.mxu0 0
      %95 = vmatprep.subr.bf16.mxu0 0
      %96 = vmatpush1.bf16.msra.mxu0 0
      %97 = vmatprep.subr.bf16.mxu0 0
      %98 = vmatpush1.bf16.msra.mxu0 0
      %99 = vmatprep.subr.bf16.mxu0 0
      %100 = vmatpush1.bf16.msra.mxu0 0
      %101 = vmatprep.subr.bf16.mxu0 0
      %102 = vmatpush1.bf16.msra.mxu0 0
      %103 = vmatprep.subr.bf16.mxu0 0
      %104 = vmatpush1.bf16.msra.mxu0 0
      %105 = vmatprep.subr.bf16.mxu0 0
      %106 = vmatpush1.bf16.msra.mxu0 0
      %107 = vmatprep.mubr.bf16.mxu0 0
      %108 = vmatmul.mubr.bf16.gmra.mrb[0].mxu0 %v73
      %v109 = vpop.f32.mrb[0].mxu0
      %v110 = vadd.f32 %v52, %v109
      %v111 = vpop.f32.mrb[0].mxu0
      %v112 = vpop.f32.mrb[0].mxu0
      %v113 = vadd.f32 %v52, %v112
      %v114 = vpop.f32.mrb[0].mxu0
      %115 = vdwg.mxu0
      %v116 = vld [vmem:[%s0] sm:$0xff]
      %v117 = vld [vmem:[%s0 + $0x8] sm:$0xff]
      %v118 = vadd.f32 %v116, %v110
      %v119 = vadd.f32 %v117, %v113
      %120 = vst.msk [vmem:[#allocation2] sm:$0xff] %vm71, %v118
      %121 = vst.msk [vmem:[#allocation2 + $0x8] sm:$0xff] %vm71, %v119
      %v122 = vld [vmem:[%s4] sm:$0x1]
      %v123 = vld [vmem:[%s5] sm:$0x1]
      %v124 = vsel %vm71, %v118, 0.0
      %125 = vadd.xlane.f32.xlu0 %v124
      %v126 = vpop.xlane.xlu0 %125
      %v127 = vsel %vm71, %v119, 0.0
      %128 = vadd.xlane.f32.xlu0 %v127
      %v129 = vpop.xlane.xlu0 %128
      %v130 = vrcp.pop 32.0
      %v131 = vmul.f32 %v126, %v130
      %v132 = vmul.f32 %v129, %v130
      %v133 = vsub.f32 %v118, %v131
      %v134 = vsub.f32 %v119, %v132
      %v135 = vmul.f32 %v133, %v133
      %v136 = vmul.f32 %v134, %v134
      %v137 = vsel %vm71, %v135, 0.0
      %138 = vadd.xlane.f32.xlu0 %v137
      %v139 = vpop.xlane.xlu0 %138
      %v140 = vsel %vm71, %v136, 0.0
      %141 = vadd.xlane.f32.xlu0 %v140
      %v142 = vpop.xlane.xlu0 %141
      %v143 = vmul.f32 %v139, %v130
      %v144 = vmul.f32 %v142, %v130
      %v145 = vadd.f32 %v143, 1e-05
      %v146 = vadd.f32 %v144, 1e-05
      %v147 = vrsqrt.pop %v145
      %v148 = vrsqrt.pop %v146
      %v150 = vlaneseq
      %v151 = vshrl.u32 %v150, 7
      %v152 = vsub.s32 0, %v151
      %v153 = vrot.slane %v122, %v152
      %v155 = vmul.f32 %v147, %v153
      %v156 = vmul.f32 %v148, %v153
      %v157 = vmul.f32 %v133, %v155
      %v158 = vmul.f32 %v134, %v156
      %v160 = vlaneseq
      %v161 = vshrl.u32 %v160, 7
      %v162 = vsub.s32 0, %v161
      %v163 = vrot.slane %v123, %v162
      %v165 = vadd.f32 %v157, %v163
      %v166 = vadd.f32 %v158, %v163
      %v167 = vpack.c.bf16 %v166, %v165
      %168 = vst.msk [vmem:[#allocation3] sm:$0xff] %vm71, %v167
      %169 = vst.msk [vmem:[#allocation4] sm:$0xff] %vm71, 0.0
      %170 = vst.msk [vmem:[#allocation4 + $0x8] sm:$0xff] %vm71, 0.0
    $region45: #{residual_attention_block.5} parent=1 // pred_fallthru
      _
    %v171 = vld [vmem:[#allocation3] sm:$0xff]
    %v172 = vld [vmem:[%s6] sm:$0xf]
    %v173 = vld [vmem:[%s6 + $0x4] sm:$0xf]
    %v174 = vld [vmem:[%s6 + $0x8] sm:$0xf]
    %v175 = vld [vmem:[%s6 + $0xc] sm:$0xf]
    %v176 = vld [vmem:[%s7] sm:$0x1]
    %v178 = vlaneseq
    %v179 = vshrl.u32 %v178, 7
    %v180 = vsub.s32 0, %v179
    %v181 = vrot.slane %v176, %v180
    %v187 = vunpack.c.l.b16 %v172
    %v188 = vunpack.c.l.b16 %v173
    %v189 = vunpack.c.l.b16 %v174
    %v190 = vunpack.c.l.b16 %v175
    %v191 = vpack.c.b16 %v188, %v187
    %v192 = vpack.c.b16 %v190, %v189
    %vm195 = vcmask 261120
    %v197 = vsel %vm195, %v171, 0
    %199 = vmatprep.subr.bf16.mxu0 0
    %200 = vmatpush1.bf16.msra.mxu0 %v191
    %201 = vmatprep.subr.bf16.mxu0 0
    %202 = vmatpush1.bf16.msra.mxu0 %v192
    %203 = vmatprep.subr.bf16.mxu0 0
    %204 = vmatpush1.bf16.msra.mxu0 0
    %205 = vmatprep.subr.bf16.mxu0 0
    %206 = vmatpush1.bf16.msra.mxu0 0
    %207 = vmatprep.subr.bf16.mxu0 0
    %208 = vmatpush1.bf16.msra.mxu0 0
    %209 = vmatprep.subr.bf16.mxu0 0
    %210 = vmatpush1.bf16.msra.mxu0 0
    %211 = vmatprep.subr.bf16.mxu0 0
    %212 = vmatpush1.bf16.msra.mxu0 0
    %213 = vmatprep.subr.bf16.mxu0 0
    %214 = vmatpush1.bf16.msra.mxu0 0
    %215 = vmatprep.subr.bf16.mxu0 0
    %216 = vmatpush1.bf16.msra.mxu0 0
    %217 = vmatprep.subr.bf16.mxu0 0
    %218 = vmatpush1.bf16.msra.mxu0 0
    %219 = vmatprep.subr.bf16.mxu0 0
    %220 = vmatpush1.bf16.msra.mxu0 0
    %221 = vmatprep.subr.bf16.mxu0 0
    %222 = vmatpush1.bf16.msra.mxu0 0
    %223 = vmatprep.subr.bf16.mxu0 0
    %224 = vmatpush1.bf16.msra.mxu0 0
    %225 = vmatprep.subr.bf16.mxu0 0
    %226 = vmatpush1.bf16.msra.mxu0 0
    %227 = vmatprep.subr.bf16.mxu0 0
    %228 = vmatpush1.bf16.msra.mxu0 0
    %229 = vmatprep.subr.bf16.mxu0 0
    %230 = vmatpush1.bf16.msra.mxu0 0
    %231 = vmatprep.mubr.bf16.mxu0 0
    %232 = vmatmul.mubr.bf16.gmra.mrb[0].mxu0 %v197
    %v233 = vpop.f32.mrb[0].mxu0
    %v234 = vadd.f32 %v181, %v233
    %v235 = vpop.f32.mrb[0].mxu0
    %v236 = vpop.f32.mrb[0].mxu0
    %v237 = vadd.f32 %v181, %v236
    %v238 = vpop.f32.mrb[0].mxu0
    %239 = vdwg.mxu0
    %v240 = vmul.f32 %v234, 0.5
    %v241 = vmul.f32 %v237, 0.5
    %v242 = vmul.f32 %v234, 0.70710677
    %v243 = vmul.f32 %v237, 0.70710677
    %v244 = verf.f32.pop %v242
    %v245 = verf.f32.pop %v243
    %v246 = vadd.f32 %v244, 1.0
    %v247 = vadd.f32 %v245, 1.0
    %v248 = vmul.f32 %v240, %v246
    %v249 = vmul.f32 %v241, %v247
    %v250 = vld [vmem:[#allocation4] sm:$0xff]
    %v251 = vld [vmem:[#allocation4 + $0x8] sm:$0xff]
    %v252 = vpack.c.bf16 %v249, %v248
    %v253 = vld [vmem:[%s8] sm:$0xf]
    %v254 = vld [vmem:[%s8 + $0x4] sm:$0xf]
    %v255 = vld [vmem:[%s8 + $0x8] sm:$0xf]
    %v256 = vld [vmem:[%s8 + $0xc] sm:$0xf]
    %v257 = vld [vmem:[%s8 + $0x10] sm:$0xf]
    %v258 = vld [vmem:[%s8 + $0x14] sm:$0xf]
    %v259 = vld [vmem:[%s8 + $0x18] sm:$0xf]
    %v260 = vld [vmem:[%s8 + $0x1c] sm:$0xf]
    %v261 = vld [vmem:[%s8 + $0x20] sm:$0xf]
    %v262 = vld [vmem:[%s8 + $0x24] sm:$0xf]
    %v263 = vld [vmem:[%s8 + $0x28] sm:$0xf]
    %v264 = vld [vmem:[%s8 + $0x2c] sm:$0xf]
    %v265 = vld [vmem:[%s8 + $0x30] sm:$0xf]
    %v266 = vld [vmem:[%s8 + $0x34] sm:$0xf]
    %v267 = vld [vmem:[%s8 + $0x38] sm:$0xf]
    %v268 = vld [vmem:[%s8 + $0x3c] sm:$0xf]
    %v285 = vunpack.c.l.b16 %v253
    %v286 = vunpack.c.l.b16 %v254
    %v287 = vunpack.c.l.b16 %v255
    %v288 = vunpack.c.l.b16 %v256
    %v289 = vunpack.c.l.b16 %v257
    %v290 = vunpack.c.l.b16 %v258
    %v291 = vunpack.c.l.b16 %v259
    %v292 = vunpack.c.l.b16 %v260
    %v293 = vunpack.c.l.b16 %v261
    %v294 = vunpack.c.l.b16 %v262
    %v295 = vunpack.c.l.b16 %v263
    %v296 = vunpack.c.l.b16 %v264
    %v297 = vunpack.c.l.b16 %v265
    %v298 = vunpack.c.l.b16 %v266
    %v299 = vunpack.c.l.b16 %v267
    %v300 = vunpack.c.l.b16 %v268
    %v301 = vpack.c.b16 %v286, %v285
    %v302 = vpack.c.b16 %v288, %v287
    %v303 = vpack.c.b16 %v290, %v289
    %v304 = vpack.c.b16 %v292, %v291
    %v305 = vpack.c.b16 %v294, %v293
    %v306 = vpack.c.b16 %v296, %v295
    %v307 = vpack.c.b16 %v298, %v297
    %v308 = vpack.c.b16 %v300, %v299
    %317 = vmatprep.subr.bf16.mxu0 0
    %318 = vmatpush1.bf16.msra.mxu0 %v301
    %319 = vmatprep.subr.bf16.mxu0 0
    %320 = vmatpush1.bf16.msra.mxu0 %v302
    %321 = vmatprep.subr.bf16.mxu0 0
    %322 = vmatpush1.bf16.msra.mxu0 %v303
    %323 = vmatprep.subr.bf16.mxu0 0
    %324 = vmatpush1.bf16.msra.mxu0 %v304
    %325 = vmatprep.subr.bf16.mxu0 0
    %326 = vmatpush1.bf16.msra.mxu0 %v305
    %327 = vmatprep.subr.bf16.mxu0 0
    %328 = vmatpush1.bf16.msra.mxu0 %v306
    %329 = vmatprep.subr.bf16.mxu0 0
    %330 = vmatpush1.bf16.msra.mxu0 %v307
    %331 = vmatprep.subr.bf16.mxu0 0
    %332 = vmatpush1.bf16.msra.mxu0 %v308
    %333 = vmatprep.subr.bf16.mxu0 0
    %334 = vmatpush1.bf16.msra.mxu0 0
    %335 = vmatprep.subr.bf16.mxu0 0
    %336 = vmatpush1.bf16.msra.mxu0 0
    %337 = vmatprep.subr.bf16.mxu0 0
    %338 = vmatpush1.bf16.msra.mxu0 0
    %339 = vmatprep.subr.bf16.mxu0 0
    %340 = vmatpush1.bf16.msra.mxu0 0
    %341 = vmatprep.subr.bf16.mxu0 0
    %342 = vmatpush1.bf16.msra.mxu0 0
    %343 = vmatprep.subr.bf16.mxu0 0
    %344 = vmatpush1.bf16.msra.mxu0 0
    %345 = vmatprep.subr.bf16.mxu0 0
    %346 = vmatpush1.bf16.msra.mxu0 0
    %347 = vmatprep.subr.bf16.mxu0 0
    %348 = vmatpush1.bf16.msra.mxu0 0
    %349 = vmatprep.mubr.bf16.mxu0 0
    %350 = vmatmul.mubr.bf16.gmra.mrb[0].mxu0 %v252
    %v351 = vpop.f32.mrb[0].mxu0
    %v352 = vadd.f32 0.0, %v351
    %v353 = vpop.f32.mrb[0].mxu0
    %v354 = vpop.f32.mrb[0].mxu0
    %v355 = vadd.f32 0.0, %v354
    %v356 = vpop.f32.mrb[0].mxu0
    %357 = vdwg.mxu0
    %v358 = vadd.f32 %v250, %v352
    %v359 = vadd.f32 %v251, %v355
    %360 = vst.msk [vmem:[#allocation4] sm:$0xff] %vm195, %v358
    %361 = vst.msk [vmem:[#allocation4 + $0x8] sm:$0xff] %vm195, %v359
    // Predicated region
    $region46: #{residual_attention_block.5} parent=1 // pred_check
      %p362 = pneg %p37
    $region47: #{residual_attention_block.5} parent=1 // pred_check_branch
      %364 = sbr.rel (%p362) target = $region49
    $region48: #{residual_attention_block.5} parent=1 // pred_region
      %v365 = vld [vmem:[#allocation2] sm:$0xff]
      %v366 = vld [vmem:[#allocation2 + $0x8] sm:$0xff]
      %v367 = vld [vmem:[#allocation4] sm:$0xff]
      %v368 = vld [vmem:[#allocation4 + $0x8] sm:$0xff]
      %v369 = vadd.f32 %v365, %v367
      %v370 = vadd.f32 %v366, %v368
      %v371 = vld [vmem:[%s9] sm:$0x1]
      %v373 = vlaneseq
      %v374 = vshrl.u32 %v373, 7
      %v375 = vsub.s32 0, %v374
      %v376 = vrot.slane %v371, %v375
      %v378 = vadd.f32 %v369, %v376
      %v379 = vadd.f32 %v370, %v376
      %380 = vst.msk [vmem:[#allocation5] sm:$0xff] %vm195, %v378
      %381 = vst.msk [vmem:[#allocation5 + $0x8] sm:$0xff] %vm195, %v379
    $region49: #{residual_attention_block.5} parent=1 // pred_fallthru
      _
    // Predicated region
    $region50: #{residual_attention_block.5} parent=1 // pred_check
      _
    $region51: #{residual_attention_block.5} parent=1 // pred_check_branch
      %383 = sbr.rel (0) target = $region53
    $region52: #{residual_attention_block.5} parent=1 // pred_region
      %s385 = ssub.s32 256, 256
      %386 = vsyncadd [#allocation6], %s385
      %s387 = sshll.u32 [#allocation5], 4
      %s388 = int_to_ptr.vmem [resolvable:$true] %s387
      %393 = dma.vmem_to_hbm [thread:$0]  %s388, 256, %s10, [#allocation6], 128, 128, 8
    $region53: #{residual_attention_block.5} parent=1 // pred_fallthru
      _
    // Predicated region
    $region54: #{residual_attention_block.5} parent=1 // pred_check
      _
    $region55: #{residual_attention_block.5} parent=1 // pred_check_branch
      %395 = sbr.rel (0) target = $region57
    $region56: #{residual_attention_block.5} parent=1 // pred_region
      %396 = dma.done [#allocation6], 256
    $region57: #{residual_attention_block.5} parent=1 // pred_fallthru
      _
    %397 = vsyncpa [#allocation6], 1

// kernel: residual_attention_block.3
$region0: #{residual_attention_block.3}
  #allocation0 [shape = 'u32[]', space=smem, size = 0x4, offset = 0x4, fixed_abs, tag = 'smem constant byte address 0x4 - core index']
  #allocation1 [shape = 'u32[144,128]{1,0:T(1,128)}', space=vmem, size = 0x12000, scoped, tag = 'internal scratch']
  %s0 = inlined_call_operand.vmem [shape: f32[2,8,32], index: 0, kind: input, shape index: {}]
  %s1 = inlined_call_operand.vmem [shape: f32[1,32], index: 1, kind: input, shape index: {}]
  %s2 = inlined_call_operand.vmem [shape: f32[1,32], index: 2, kind: input, shape index: {}]
  %s3 = inlined_call_operand.vmem [shape: bf16[32,96], index: 3, kind: input, shape index: {}]
  %s4 = inlined_call_operand.vmem [shape: f32[1,96], index: 4, kind: input, shape index: {}]
  %s5 = inlined_call_operand.vmem [shape: bf16[2,8,32], index: 5, kind: output, shape index: {0}]
  %s6 = inlined_call_operand.vmem [shape: bf16[2,4,8,8], index: 6, kind: output, shape index: {1}]
  %s7 = inlined_call_operand.vmem [shape: bf16[2,4,8,8], index: 7, kind: output, shape index: {2}]
  %8 = xla_tuple %s5, %s6, %s7
  %s9 = sld [smem:[#allocation0]]
  $region69: #{residual_attention_block.3} parent=0
    _
  %s11 = ssub.s32 1, %s9
  %s12 = scalar_select 0, %s11, %s9
  loop: start=0, step=1, limit=4
  $region2: #{residual_attention_block.3} parent=0 // loop_pre_header
    _
  $region3: #{residual_attention_block.3} parent=0 // loop_header
    %s14 = sphi 0, %s18
    %p15 = scmp.ge.s32.totalorder %s14, 4
    %s21 = sphi 0, %s33
    %s22 = sphi 0, %s29
    %s23 = sphi 0, %s21
    %s24 = sphi 0, %s22
    %s25 = sphi 0, %s23
    %s26 = sphi 0, %s24
    %s38 = sphi 0, %s40
    %s41 = sphi 0, %s38
    %s42 = sphi 0, %s41
    %s58 = sphi 0, %s42
    %s62 = sphi 0, %s62
    %s64 = sphi 0, %s62
    %s65 = sphi 0, %s64
    %s79 = sphi 0, %s65
    %s83 = sphi 0, %s83
    %s85 = sphi 0, %s83
    %s86 = sphi 0, %s85
    %s100 = sphi 0, %s86
    %s104 = sphi 0, %s104
    %s106 = sphi 0, %s104
    %s107 = sphi 0, %s106
    %s121 = sphi 0, %s107
    %s125 = sphi 0, %s125
    %s127 = sphi 0, %s125
    %s128 = sphi 0, %s127
    %s142 = sphi 0, %s128
    %s150 = sphi 0, %s152
    %s153 = sphi 0, %s150
    %s154 = sphi 0, %s153
    %s170 = sphi 0, %s154
    %s178 = sphi 0, %s180
    %s181 = sphi 0, %s178
    %s182 = sphi 0, %s181
    %s198 = sphi 0, %s182
    %s206 = sphi 0, %s208
    %s209 = sphi 0, %s206
    %s210 = sphi 0, %s209
    %s226 = sphi 0, %s210
  $region4: #{residual_attention_block.3} parent=0 // loop_header_branch
    %17 = sbr.rel (%p15) target = $region8
  $region5: #{residual_attention_block.3} parent=0 // loop_body
    %s19 = ssub.s32 %s14, 1
    %s20 = ssub.s32 %s14, 2
    %s27 = sadd.s32 1, %s22
    %p28 = scmp.ge.s32.totalorder %s27, 1
    %s29 = scalar_select %p28, 0, %s27
    %s30 = sadd.s32 1, %s21
    %s31 = scalar_select %p28, %s30, %s21
    %p32 = scmp.ge.s32.totalorder %s31, 2
    %s33 = scalar_select %p32, 0, %s31
    %s34 = ssub.s32 %s21, %s33
    %s35 = ssub.s32 %s22, %s29
    %s36 = sor.u32 %s34, %s35
    %p37 = scmp.eq.s32.totalorder %s36, 0
    %s39 = sadd.s32 %s38, 1
    %s40 = scalar_select %p37, %s38, %s39
    %p43 = pneg %p37
    %p44 = scmp.eq.s32.totalorder %s14, 1
    %p45 = por %p43, %p44
    %p46 = scmp.ne.s32.totalorder %s38, %s41
    %p47 = scmp.eq.s32.totalorder %s14, 0
    %p48 = por %p46, %p47
    %p49 = scmp.ne.s32.totalorder %s38, %s41
    %p50 = scmp.eq.s32.totalorder %s19, 1
    %p51 = por %p49, %p50
    %p52 = scmp.ne.s32.totalorder %s41, %s42
    %p53 = scmp.eq.s32.totalorder %s19, 0
    %p54 = por %p52, %p53
    %p55 = scmp.ne.s32.totalorder %s41, %s42
    %p56 = scmp.eq.s32.totalorder %s20, 1
    %p57 = por %p55, %p56
    %p59 = scmp.ne.s32.totalorder %s42, %s58
    %p60 = scmp.eq.s32.totalorder %s20, 0
    %p61 = por %p59, %p60
    %s63 = sadd.s32 %s62, 1
    %p66 = scmp.eq.s32.totalorder %s14, 1
    %p67 = scmp.ne.s32.totalorder %s62, %s64
    %p68 = scmp.eq.s32.totalorder %s14, 0
    %p69 = por %p67, %p68
    %p70 = scmp.ne.s32.totalorder %s62, %s64
    %p71 = scmp.eq.s32.totalorder %s19, 1
    %p72 = por %p70, %p71
    %p73 = scmp.ne.s32.totalorder %s64, %s65
    %p74 = scmp.eq.s32.totalorder %s19, 0
    %p75 = por %p73, %p74
    %p76 = scmp.ne.s32.totalorder %s64, %s65
    %p77 = scmp.eq.s32.totalorder %s20, 1
    %p78 = por %p76, %p77
    %p80 = scmp.ne.s32.totalorder %s65, %s79
    %p81 = scmp.eq.s32.totalorder %s20, 0
    %p82 = por %p80, %p81
    %s84 = sadd.s32 %s83, 1
    %p87 = scmp.eq.s32.totalorder %s14, 1
    %p88 = scmp.ne.s32.totalorder %s83, %s85
    %p89 = scmp.eq.s32.totalorder %s14, 0
    %p90 = por %p88, %p89
    %p91 = scmp.ne.s32.totalorder %s83, %s85
    %p92 = scmp.eq.s32.totalorder %s19, 1
    %p93 = por %p91, %p92
    %p94 = scmp.ne.s32.totalorder %s85, %s86
    %p95 = scmp.eq.s32.totalorder %s19, 0
    %p96 = por %p94, %p95
    %p97 = scmp.ne.s32.totalorder %s85, %s86
    %p98 = scmp.eq.s32.totalorder %s20, 1
    %p99 = por %p97, %p98
    %p101 = scmp.ne.s32.totalorder %s86, %s100
    %p102 = scmp.eq.s32.totalorder %s20, 0
    %p103 = por %p101, %p102
    %s105 = sadd.s32 %s104, 1
    %p108 = scmp.eq.s32.totalorder %s14, 1
    %p109 = scmp.ne.s32.totalorder %s104, %s106
    %p110 = scmp.eq.s32.totalorder %s14, 0
    %p111 = por %p109, %p110
    %p112 = scmp.ne.s32.totalorder %s104, %s106
    %p113 = scmp.eq.s32.totalorder %s19, 1
    %p114 = por %p112, %p113
    %p115 = scmp.ne.s32.totalorder %s106, %s107
    %p116 = scmp.eq.s32.totalorder %s19, 0
    %p117 = por %p115, %p116
    %p118 = scmp.ne.s32.totalorder %s106, %s107
    %p119 = scmp.eq.s32.totalorder %s20, 1
    %p120 = por %p118, %p119
    %p122 = scmp.ne.s32.totalorder %s107, %s121
    %p123 = scmp.eq.s32.totalorder %s20, 0
    %p124 = por %p122, %p123
    %s126 = sadd.s32 %s125, 1
    %p129 = scmp.eq.s32.totalorder %s14, 1
    %p130 = scmp.ne.s32.totalorder %s125, %s127
    %p131 = scmp.eq.s32.totalorder %s14, 0
    %p132 = por %p130, %p131
    %p133 = scmp.ne.s32.totalorder %s125, %s127
    %p134 = scmp.eq.s32.totalorder %s19, 1
    %p135 = por %p133, %p134
    %p136 = scmp.ne.s32.totalorder %s127, %s128
    %p137 = scmp.eq.s32.totalorder %s19, 0
    %p138 = por %p136, %p137
    %p139 = scmp.ne.s32.totalorder %s127, %s128
    %p140 = scmp.eq.s32.totalorder %s20, 1
    %p141 = por %p139, %p140
    %p143 = scmp.ne.s32.totalorder %s128, %s142
    %p144 = scmp.eq.s32.totalorder %s20, 0
    %p145 = por %p143, %p144
    %s146 = ssub.s32 %s21, %s33
    %s147 = ssub.s32 %s22, %s29
    %s148 = sor.u32 %s146, %s147
    %p149 = scmp.eq.s32.totalorder %s148, 0
    %s151 = sadd.s32 %s150, 1
    %s152 = scalar_select %p149, %s150, %s151
    %p155 = pneg %p149
    %p156 = scmp.eq.s32.totalorder %s14, 1
    %p157 = por %p155, %p156
    %p158 = scmp.ne.s32.totalorder %s150, %s153
    %p159 = scmp.eq.s32.totalorder %s14, 0
    %p160 = por %p158, %p159
    %p161 = scmp.ne.s32.totalorder %s150, %s153
    %p162 = scmp.eq.s32.totalorder %s19, 1
    %p163 = por %p161, %p162
    %p164 = scmp.ne.s32.totalorder %s153, %s154
    %p165 = scmp.eq.s32.totalorder %s19, 0
    %p166 = por %p164, %p165
    %p167 = scmp.ne.s32.totalorder %s153, %s154
    %p168 = scmp.eq.s32.totalorder %s20, 1
    %p169 = por %p167, %p168
    %p171 = scmp.ne.s32.totalorder %s154, %s170
    %p172 = scmp.eq.s32.totalorder %s20, 0
    %p173 = por %p171, %p172
    %s174 = sadd.s32 %s21, %s22
    %s175 = sadd.s32 %s33, %s29
    %s176 = ssub.s32 %s174, %s175
    %p177 = scmp.eq.s32.totalorder %s176, 0
    %s179 = sadd.s32 %s178, 1
    %s180 = scalar_select %p177, %s178, %s179
    %p183 = pneg %p177
    %p184 = scmp.eq.s32.totalorder %s14, 1
    %p185 = por %p183, %p184
    %p186 = scmp.ne.s32.totalorder %s178, %s181
    %p187 = scmp.eq.s32.totalorder %s14, 0
    %p188 = por %p186, %p187
    %p189 = scmp.ne.s32.totalorder %s178, %s181
    %p190 = scmp.eq.s32.totalorder %s19, 1
    %p191 = por %p189, %p190
    %p192 = scmp.ne.s32.totalorder %s181, %s182
    %p193 = scmp.eq.s32.totalorder %s19, 0
    %p194 = por %p192, %p193
    %p195 = scmp.ne.s32.totalorder %s181, %s182
    %p196 = scmp.eq.s32.totalorder %s20, 1
    %p197 = por %p195, %p196
    %p199 = scmp.ne.s32.totalorder %s182, %s198
    %p200 = scmp.eq.s32.totalorder %s20, 0
    %p201 = por %p199, %p200
    %s202 = sadd.s32 %s21, %s22
    %s203 = sadd.s32 %s33, %s29
    %s204 = ssub.s32 %s202, %s203
    %p205 = scmp.eq.s32.totalorder %s204, 0
    %s207 = sadd.s32 %s206, 1
    %s208 = scalar_select %p205, %s206, %s207
    %p211 = pneg %p205
    %p212 = scmp.eq.s32.totalorder %s14, 1
    %p213 = por %p211, %p212
    %p214 = scmp.ne.s32.totalorder %s206, %s209
    %p215 = scmp.eq.s32.totalorder %s14, 0
    %p216 = por %p214, %p215
    %p217 = scmp.ne.s32.totalorder %s206, %s209
    %p218 = scmp.eq.s32.totalorder %s19, 1
    %p219 = por %p217, %p218
    %p220 = scmp.ne.s32.totalorder %s209, %s210
    %p221 = scmp.eq.s32.totalorder %s19, 0
    %p222 = por %p220, %p221
    %p223 = scmp.ne.s32.totalorder %s209, %s210
    %p224 = scmp.eq.s32.totalorder %s20, 1
    %p225 = por %p223, %p224
    %p227 = scmp.ne.s32.totalorder %s210, %s226
    %p228 = scmp.eq.s32.totalorder %s20, 0
    %p229 = por %p227, %p228
    %p230 = scmp.le.s32.totalorder 1, %s14
    %p231 = scmp.lt.s32.totalorder %s14, 3
    %p232 = pnand %p230, %p231
    %p233 = pneg %p232
    // Predicated region
    $region9: #{residual_attention_block.3} parent=5 // pred_check
      _
    $region10: #{residual_attention_block.3} parent=5 // pred_check_branch
      %235 = sbr.rel (%p232) target = $region12
    $region11: #{residual_attention_block.3} parent=5 // pred_region
      %s236 = ssub.s32 %s14, 1
      // Predicated region
      $region13: #{residual_attention_block.3} parent=11 // pred_check
        %p237 = pneg %p75
      $region14: #{residual_attention_block.3} parent=11 // pred_check_branch
        %239 = sbr.rel (%p237) target = $region16
      $region15: #{residual_attention_block.3} parent=11 // pred_region
        _
      $region16: #{residual_attention_block.3} parent=11 // pred_fallthru
        _
      // Predicated region
      $region17: #{residual_attention_block.3} parent=11 // pred_check
        %p240 = pneg %p96
      $region18: #{residual_attention_block.3} parent=11 // pred_check_branch
        %242 = sbr.rel (%p240) target = $region20
      $region19: #{residual_attention_block.3} parent=11 // pred_region
        _
      $region20: #{residual_attention_block.3} parent=11 // pred_fallthru
        _
      // Predicated region
      $region21: #{residual_attention_block.3} parent=11 // pred_check
        %p243 = pneg %p117
      $region22: #{residual_attention_block.3} parent=11 // pred_check_branch
        %245 = sbr.rel (%p243) target = $region24
      $region23: #{residual_attention_block.3} parent=11 // pred_region
        _
      $region24: #{residual_attention_block.3} parent=11 // pred_fallthru
        _
      // Predicated region
      $region25: #{residual_attention_block.3} parent=11 // pred_check
        %p246 = pneg %p138
      $region26: #{residual_attention_block.3} parent=11 // pred_check_branch
        %248 = sbr.rel (%p246) target = $region28
      $region27: #{residual_attention_block.3} parent=11 // pred_region
        _
      $region28: #{residual_attention_block.3} parent=11 // pred_fallthru
        _
    $region12: #{residual_attention_block.3} parent=5 // pred_fallthru
      _
    %p249 = scmp.lt.s32.totalorder %s14, 2
    // Predicated region
    $region29: #{residual_attention_block.3} parent=5 // pred_check
      %p250 = pneg %p249
    $region30: #{residual_attention_block.3} parent=5 // pred_check_branch
      %252 = sbr.rel (%p250) target = $region32
    $region31: #{residual_attention_block.3} parent=5 // pred_region
      // Predicated region
      $region33: #{residual_attention_block.3} parent=31 // pred_check
        %p253 = pneg %p48
      $region34: #{residual_attention_block.3} parent=31 // pred_check_branch
        %255 = sbr.rel (%p253) target = $region36
      $region35: #{residual_attention_block.3} parent=31 // pred_region
        %p256 = scmp.lt.s32.totalorder %s21, 1
        %s257 = scalar_select %p256, %s21, 1
        %p258 = scmp.lt.s32.totalorder %s22, 0
        %s259 = scalar_select %p258, %s22, 0
        %s260 = sadd.s32 %s259, %s257
        %s261 = smul.addr %s260, 8
        %s262 = scalar_lea.vmem %s0, %s261
      $region36: #{residual_attention_block.3} parent=31 // pred_fallthru
        _
    $region32: #{residual_attention_block.3} parent=5 // pred_fallthru
      _
    %p263 = scmp.le.s32.totalorder 1, %s14
    %p264 = scmp.lt.s32.totalorder %s14, 3
    %p265 = pnand %p263, %p264
    %p266 = pneg %p265
    // Predicated region
    $region37: #{residual_attention_block.3} parent=5 // pred_check
      _
    $region38: #{residual_attention_block.3} parent=5 // pred_check_branch
      %268 = sbr.rel (%p265) target = $region40
    $region39: #{residual_attention_block.3} parent=5 // pred_region
      %s269 = ssub.s32 %s14, 1
      %p270 = scmp.lt.s32.totalorder %s23, 1
      %s271 = scalar_select %p270, %s23, 1
      %p272 = scmp.lt.s32.totalorder %s24, 0
      %s273 = scalar_select %p272, %s24, 0
      %s274 = sadd.s32 %s273, %s271
      %s275 = smul.addr %s274, 8
      %s276 = scalar_lea.vmem %s0, %s275
      %p277 = pneg %p54
      %p278 = pneg %p51
      %p279 = pneg %p75
      %p280 = pneg %p72
      %p281 = pneg %p96
      %p282 = pneg %p93
      %p283 = pneg %p117
      %p284 = pneg %p114
      %p285 = pneg %p138
      %p286 = pneg %p135
      %p287 = pneg %p166
      %p288 = pneg %p163
      %p289 = scmp.lt.s32.totalorder %s23, 1
      %s290 = scalar_select %p289, %s23, 1
      %p291 = scmp.lt.s32.totalorder %s24, 0
      %s292 = scalar_select %p291, %s24, 0
      %s293 = sadd.s32 %s292, %s290
      %s294 = smul.addr %s293, 4
      %s295 = scalar_lea.vmem %s5, %s294
      %p296 = pneg %p194
      %p297 = pneg %p191
      %s298 = sadd.s32 %s23, %s24
      %p299 = scmp.lt.s32.totalorder %s298, 1
      %s300 = scalar_select %p299, %s298, 1
      %s301 = smul.addr %s300, 4
      %s302 = smul.addr %s301, 4
      %s303 = scalar_lea.vmem %s6, %s302
      %p304 = pneg %p222
      %p305 = pneg %p219
      %s306 = sadd.s32 %s23, %s24
      %p307 = scmp.lt.s32.totalorder %s306, 1
      %s308 = scalar_select %p307, %s306, 1
      %s309 = smul.addr %s308, 4
      %s310 = smul.addr %s309, 4
      %s311 = scalar_lea.vmem %s7, %s310
      %p312 = scmp.lt.s32.totalorder %s23, 1
      %s313 = scalar_select %p312, %s23, 1
      %p314 = scmp.lt.s32.totalorder %s24, 0
      %s315 = scalar_select %p314, %s24, 0
      %s316 = sadd.s32 %s315, %s313
      %s317 = smul.addr %s316, 8
      %s318 = scalar_lea.vmem %s0, %s317
      %p319 = scmp.lt.s32.totalorder %s23, 1
      %s320 = scalar_select %p319, %s23, 1
      %p321 = scmp.lt.s32.totalorder %s24, 0
      %s322 = scalar_select %p321, %s24, 0
      %s323 = sadd.s32 %s322, %s320
      %s324 = smul.addr %s323, 4
      %s325 = scalar_lea.vmem %s5, %s324
      %s326 = sadd.s32 %s23, %s24
      %p327 = scmp.lt.s32.totalorder %s326, 1
      %s328 = scalar_select %p327, %s326, 1
      %s329 = smul.addr %s328, 4
      %s330 = smul.addr %s329, 4
      %s331 = scalar_lea.vmem %s6, %s330
      %s332 = sadd.s32 %s23, %s24
      %s333 = sadd.s32 %s23, %s24
      %p334 = scmp.lt.s32.totalorder %s333, 1
      %s335 = scalar_select %p334, %s333, 1
      %s336 = smul.addr %s335, 4
      %s337 = smul.addr %s336, 4
      %s338 = scalar_lea.vmem %s7, %s337
      %s339 = sadd.s32 %s23, %s24
      %v341 = vld [vmem:[%s318] sm:$0xff]
      %v342 = vld [vmem:[%s1] sm:$0x1]
      %v343 = vld [vmem:[%s2] sm:$0x1]
      %vm344 = vcmask 261120
      %v345 = vsel %vm344, %v341, 0.0
      %346 = vadd.xlane.f32.xlu0 %v345
      %v347 = vpop.xlane.xlu0 %346
      %v348 = vrcp.pop 32.0
      %v349 = vmul.f32 %v347, %v348
      %v350 = vsub.f32 %v341, %v349
      %v351 = vmul.f32 %v350, %v350
      %v352 = vsel %vm344, %v351, 0.0
      %353 = vadd.xlane.f32.xlu0 %v352
      %v354 = vpop.xlane.xlu0 %353
      %v355 = vmul.f32 %v354, %v348
      %v356 = vadd.f32 %v355, 1e-05
      %v357 = vrsqrt.pop %v356
      %v359 = vlaneseq
      %v360 = vshrl.u32 %v359, 7
      %v361 = vsub.s32 0, %v360
      %v362 = vrot.slane %v342, %v361
      %v364 = vmul.f32 %v357, %v362
      %v365 = vmul.f32 %v350, %v364
      %v367 = vlaneseq
      %v368 = vshrl.u32 %v367, 7
      %v369 = vsub.s32 0, %v368
      %v370 = vrot.slane %v343, %v369
      %v372 = vadd.f32 %v365, %v370
      %v373 = vpack.c.bf16 %v372, %v372
      %v374 = vld [vmem:[%s3] sm:$0xf]
      %v375 = vld [vmem:[%s3 + $0x4] sm:$0xf]
      %v376 = vld [vmem:[%s3 + $0x8] sm:$0xf]
      %v377 = vld [vmem:[%s3 + $0xc] sm:$0xf]
      %v378 = vld [vmem:[%s4] sm:$0x1]
      %v380 = vlaneseq
      %v381 = vshrl.u32 %v380, 7
      %v382 = vsub.s32 0, %v381
      %v383 = vrot.slane %v378, %v382
      %v389 = vunpack.c.l.b16 %v374
      %v390 = vunpack.c.l.b16 %v375
      %v391 = vunpack.c.l.b16 %v376
      %v392 = vunpack.c.l.b16 %v377
      %v393 = vpack.c.b16 %v390, %v389
      %v394 = vpack.c.b16 %v392, %v391
      %v398 = vsel %vm344, %v373, 0
      %400 = vmatprep.subr.bf16.mxu0 0
      %401 = vmatpush1.bf16.msra.mxu0 %v393
      %402 = vmatprep.subr.bf16.mxu0 0
      %403 = vmatpush1.bf16.msra.mxu0 %v394
      %404 = vmatprep.subr.bf16.mxu0 0
      %405 = vmatpush1.bf16.msra.mxu0 0
      %406 = vmatprep.subr.bf16.mxu0 0
      %407 = vmatpush1.bf16.msra.mxu0 0
      %408 = vmatprep.subr.bf16.mxu0 0
      %409 = vmatpush1.bf16.msra.mxu0 0
      %410 = vmatprep.subr.bf16.mxu0 0
      %411 = vmatpush1.bf16.msra.mxu0 0
      %412 = vmatprep.subr.bf16.mxu0 0
      %413 = vmatpush1.bf16.msra.mxu0 0
      %414 = vmatprep.subr.bf16.mxu0 0
      %415 = vmatpush1.bf16.msra.mxu0 0
      %416 = vmatprep.subr.bf16.mxu0 0
      %417 = vmatpush1.bf16.msra.mxu0 0
      %418 = vmatprep.subr.bf16.mxu0 0
      %419 = vmatpush1.bf16.msra.mxu0 0
      %420 = vmatprep.subr.bf16.mxu0 0
      %421 = vmatpush1.bf16.msra.mxu0 0
      %422 = vmatprep.subr.bf16.mxu0 0
      %423 = vmatpush1.bf16.msra.mxu0 0
      %424 = vmatprep.subr.bf16.mxu0 0
      %425 = vmatpush1.bf16.msra.mxu0 0
      %426 = vmatprep.subr.bf16.mxu0 0
      %427 = vmatpush1.bf16.msra.mxu0 0
      %428 = vmatprep.subr.bf16.mxu0 0
      %429 = vmatpush1.bf16.msra.mxu0 0
      %430 = vmatprep.subr.bf16.mxu0 0
      %431 = vmatpush1.bf16.msra.mxu0 0
      %432 = vmatprep.mubr.bf16.mxu0 0
      %433 = vmatmul.mubr.bf16.gmra.mrb[0].mxu0 %v398
      %v434 = vpop.f32.mrb[0].mxu0
      %v435 = vadd.f32 %v383, %v434
      %v436 = vpop.f32.mrb[0].mxu0
      %v437 = vpop.f32.mrb[0].mxu0
      %v438 = vpop.f32.mrb[0].mxu0
      %439 = vdwg.mxu0
      %v440 = vpack.c.bf16 %v435, %v435
      %vm441 = vcmask 257024
      %442 = vst.msk [vmem:[%s325] sm:$0xf] %vm441, %v440
      %444 = vrot.lane.b32.xlu0 %v440, 120
      %v445 = vpop.permute.xlu0 %444
      %446 = vrot.lane.b32.xlu0 %v440, 112
      %v447 = vpop.permute.xlu0 %446
      %448 = vrot.lane.b32.xlu0 %v440, 104
      %v449 = vpop.permute.xlu0 %448
      %450 = vrot.lane.b32.xlu0 %v440, 96
      %v451 = vpop.permute.xlu0 %450
      %452 = vrot.lane.b32.xlu0 %v445, 96
      %v453 = vpop.permute.xlu0 %452
      %454 = vrot.lane.b32.xlu0 %v447, 96
      %v455 = vpop.permute.xlu0 %454
      %456 = vrot.lane.b32.xlu0 %v449, 96
      %v457 = vpop.permute.xlu0 %456
      %v460 = vunpack.c.l.s4 1983009808
      %v461 = vunpack.c.0.s8 %v460
      %v462 = vlaneseq
      %v463 = vshrl.u32 %v462, 7
      %v464 = vsub.s32 %v461, %v463
      %v465 = vrot.slane %v451, %v464
      %v468 = vunpack.c.l.s4 1983009808
      %v469 = vunpack.c.0.s8 %v468
      %v470 = vlaneseq
      %v471 = vshrl.u32 %v470, 7
      %v472 = vsub.s32 %v469, %v471
      %v473 = vrot.slane %v455, %v472
      %v474 = vcombine.low %v465, %v473
      %v475 = vcombine.high %v465, %v473
      %v477 = vunpack.c.l.s4 1934713408
      %v478 = vunpack.c.0.s8 %v477
      %v479 = vlaneseq
      %v480 = vshrl.u32 %v479, 7
      %v481 = vsub.s32 %v478, %v480
      %v482 = vrot.slane %v474, %v481
      %v484 = vunpack.c.l.s4 1934713408
      %v485 = vunpack.c.0.s8 %v484
      %v486 = vlaneseq
      %v487 = vshrl.u32 %v486, 7
      %v488 = vsub.s32 %v485, %v487
      %v489 = vrot.slane %v475, %v488
      %v490 = vcombine.high %v482, 0
      %v491 = vcombine.high %v489, 0
      %v494 = vunpack.c.l.s4 1983009808
      %v495 = vunpack.c.0.s8 %v494
      %v496 = vlaneseq
      %v497 = vshrl.u32 %v496, 7
      %v498 = vsub.s32 %v495, %v497
      %v499 = vrot.slane %v453, %v498
      %v502 = vunpack.c.l.s4 1983009808
      %v503 = vunpack.c.0.s8 %v502
      %v504 = vlaneseq
      %v505 = vshrl.u32 %v504, 7
      %v506 = vsub.s32 %v503, %v505
      %v507 = vrot.slane %v457, %v506
      %v508 = vcombine.low %v499, %v507
      %v509 = vcombine.high %v499, %v507
      %v511 = vunpack.c.l.s4 1934713408
      %v512 = vunpack.c.0.s8 %v511
      %v513 = vlaneseq
      %v514 = vshrl.u32 %v513, 7
      %v515 = vsub.s32 %v512, %v514
      %v516 = vrot.slane %v508, %v515
      %v518 = vunpack.c.l.s4 1934713408
      %v519 = vunpack.c.0.s8 %v518
      %v520 = vlaneseq
      %v521 = vshrl.u32 %v520, 7
      %v522 = vsub.s32 %v519, %v521
      %v523 = vrot.slane %v509, %v522
      %v524 = vcombine.high %v516, 0
      %v525 = vcombine.high %v523, 0
      %v528 = vpack.i.b16 %v516, %v482
      %v530 = vshrl.u32 %v482, 16
      %v531 = vshrl.u32 %v516, 16
      %v532 = vpack.i.b16 %v531, %v530
      %v536 = vpack.i.b16 %v524, %v490
      %v538 = vshrl.u32 %v490, 16
      %v539 = vshrl.u32 %v524, 16
      %v540 = vpack.i.b16 %v539, %v538
      %v544 = vpack.i.b16 %v523, %v489
      %v546 = vshrl.u32 %v489, 16
      %v547 = vshrl.u32 %v523, 16
      %v548 = vpack.i.b16 %v547, %v546
      %v552 = vpack.i.b16 %v525, %v491
      %v554 = vshrl.u32 %v491, 16
      %v555 = vshrl.u32 %v525, 16
      %v556 = vpack.i.b16 %v555, %v554
      %v558 = vcombine.low %v528, %v544
      %v560 = vunpack.c.l.s4 1983009808
      %v561 = vunpack.c.0.s8 %v560
      %v562 = vlaneseq
      %v563 = vshrl.u32 %v562, 7
      %v564 = vsub.s32 %v561, %v563
      %v565 = vrot.slane %v558, %v564
      %v566 = vcombine.low %v536, %v552
      %v568 = vunpack.c.l.s4 1983009808
      %v569 = vunpack.c.0.s8 %v568
      %v570 = vlaneseq
      %v571 = vshrl.u32 %v570, 7
      %v572 = vsub.s32 %v569, %v571
      %v573 = vrot.slane %v566, %v572
      %v574 = vcombine.low %v565, %v573
      %v576 = vunpack.c.l.s4 1934713408
      %v577 = vunpack.c.0.s8 %v576
      %v578 = vlaneseq
      %v579 = vshrl.u32 %v578, 7
      %v580 = vsub.s32 %v577, %v579
      %v581 = vrot.slane %v574, %v580
      %v582 = vcombine.high %v581, 0
      %v583 = vcombine.low %v532, %v548
      %v585 = vunpack.c.l.s4 1983009808
      %v586 = vunpack.c.0.s8 %v585
      %v587 = vlaneseq
      %v588 = vshrl.u32 %v587, 7
      %v589 = vsub.s32 %v586, %v588
      %v590 = vrot.slane %v583, %v589
      %v591 = vcombine.low %v540, %v556
      %v593 = vunpack.c.l.s4 1983009808
      %v594 = vunpack.c.0.s8 %v593
      %v595 = vlaneseq
      %v596 = vshrl.u32 %v595, 7
      %v597 = vsub.s32 %v594, %v596
      %v598 = vrot.slane %v591, %v597
      %v599 = vcombine.low %v590, %v598
      %v601 = vunpack.c.l.s4 1934713408
      %v602 = vunpack.c.0.s8 %v601
      %v603 = vlaneseq
      %v604 = vshrl.u32 %v603, 7
      %v605 = vsub.s32 %v602, %v604
      %v606 = vrot.slane %v599, %v605
      %v607 = vcombine.high %v606, 0
      %v610 = vpack.i.b16 %v606, %v581
      %v612 = vshrl.u32 %v581, 16
      %v613 = vshrl.u32 %v606, 16
      %v614 = vpack.i.b16 %v613, %v612
      %v618 = vpack.i.b16 %v607, %v582
      %v620 = vshrl.u32 %v582, 16
      %v621 = vshrl.u32 %v607, 16
      %v622 = vpack.i.b16 %v621, %v620
      %624 = vxpose.xlu0.c.b16.start [1/8] %v610, 128
      %625 = vxpose.xlu0.c.b16.cont [2/8] 0, 128
      %626 = vxpose.xlu0.c.b16.cont [3/8] 0, 128
      %627 = vxpose.xlu0.c.b16.cont [4/8] 0, 128
      %628 = vxpose.xlu0.c.b16.cont [5/8] 0, 128
      %629 = vxpose.xlu0.c.b16.cont [6/8] 0, 128
      %630 = vxpose.xlu0.c.b16.cont [7/8] 0, 128
      %631 = vxpose.xlu0.c.b16.end [8/8] 0, 128
      %v632 = vpop.trf.xlu0
      %v633 = vpop.trf.xlu0
      %v634 = vpop.trf.xlu0
      %v635 = vpop.trf.xlu0
      %v636 = vpop.trf.xlu0
      %v637 = vpop.trf.xlu0
      %v638 = vpop.trf.xlu0
      %v639 = vpop.trf.xlu0
      %640 = vxpose.xlu0.c.b16.start [1/8] %v614, 128
      %641 = vxpose.xlu0.c.b16.cont [2/8] 0, 128
      %642 = vxpose.xlu0.c.b16.cont [3/8] 0, 128
      %643 = vxpose.xlu0.c.b16.cont [4/8] 0, 128
      %644 = vxpose.xlu0.c.b16.cont [5/8] 0, 128
      %645 = vxpose.xlu0.c.b16.cont [6/8] 0, 128
      %646 = vxpose.xlu0.c.b16.cont [7/8] 0, 128
      %647 = vxpose.xlu0.c.b16.end [8/8] 0, 128
      %v648 = vpop.trf.xlu0
      %v649 = vpop.trf.xlu0
      %v650 = vpop.trf.xlu0
      %v651 = vpop.trf.xlu0
      %v652 = vpop.trf.xlu0
      %v653 = vpop.trf.xlu0
      %v654 = vpop.trf.xlu0
      %v655 = vpop.trf.xlu0
      %656 = vxpose.xlu0.c.b16.start [1/8] %v618, 128
      %657 = vxpose.xlu0.c.b16.cont [2/8] 0, 128
      %658 = vxpose.xlu0.c.b16.cont [3/8] 0, 128
      %659 = vxpose.xlu0.c.b16.cont [4/8] 0, 128
      %660 = vxpose.xlu0.c.b16.cont [5/8] 0, 128
      %661 = vxpose.xlu0.c.b16.cont [6/8] 0, 128
      %662 = vxpose.xlu0.c.b16.cont [7/8] 0, 128
      %663 = vxpose.xlu0.c.b16.end [8/8] 0, 128
      %v664 = vpop.trf.xlu0
      %v665 = vpop.trf.xlu0
      %v666 = vpop.trf.xlu0
      %v667 = vpop.trf.xlu0
      %v668 = vpop.trf.xlu0
      %v669 = vpop.trf.xlu0
      %v670 = vpop.trf.xlu0
      %v671 = vpop.trf.xlu0
      %672 = vxpose.xlu0.c.b16.start [1/8] %v622, 128
      %673 = vxpose.xlu0.c.b16.cont [2/8] 0, 128
      %674 = vxpose.xlu0.c.b16.cont [3/8] 0, 128
      %675 = vxpose.xlu0.c.b16.cont [4/8] 0, 128
      %676 = vxpose.xlu0.c.b16.cont [5/8] 0, 128
      %677 = vxpose.xlu0.c.b16.cont [6/8] 0, 128
      %678 = vxpose.xlu0.c.b16.cont [7/8] 0, 128
      %679 = vxpose.xlu0.c.b16.end [8/8] 0, 128
      %v680 = vpop.trf.xlu0
      %v681 = vpop.trf.xlu0
      %v682 = vpop.trf.xlu0
      %v683 = vpop.trf.xlu0
      %v684 = vpop.trf.xlu0
      %v685 = vpop.trf.xlu0
      %v686 = vpop.trf.xlu0
      %v687 = vpop.trf.xlu0
      %vm688 = vcmask 60416
      %689 = vst.msk [vmem:[%s331] sm:$0xf] %vm688, %v632
      %690 = vst.msk [vmem:[%s331 + $0x4] sm:$0xf] %vm688, %v648
      %691 = vst.msk [vmem:[%s331 + $0x8] sm:$0xf] %vm688, %v664
      %692 = vst.msk [vmem:[%s331 + $0xc] sm:$0xf] %vm688, %v680
      %693 = vrot.lane.b32.xlu0 %v440, 64
      %v694 = vpop.permute.xlu0 %693
      %695 = vrot.lane.b32.xlu0 %v445, 64
      %v696 = vpop.permute.xlu0 %695
      %697 = vrot.lane.b32.xlu0 %v447, 64
      %v698 = vpop.permute.xlu0 %697
      %699 = vrot.lane.b32.xlu0 %v449, 64
      %v700 = vpop.permute.xlu0 %699
      %v703 = vunpack.c.l.s4 1983009808
      %v704 = vunpack.c.0.s8 %v703
      %v705 = vlaneseq
      %v706 = vshrl.u32 %v705, 7
      %v707 = vsub.s32 %v704, %v706
      %v708 = vrot.slane %v694, %v707
      %v711 = vunpack.c.l.s4 1983009808
      %v712 = vunpack.c.0.s8 %v711
      %v713 = vlaneseq
      %v714 = vshrl.u32 %v713, 7
      %v715 = vsub.s32 %v712, %v714
      %v716 = vrot.slane %v698, %v715
      %v717 = vcombine.low %v708, %v716
      %v718 = vcombine.high %v708, %v716
      %v720 = vunpack.c.l.s4 1934713408
      %v721 = vunpack.c.0.s8 %v720
      %v722 = vlaneseq
      %v723 = vshrl.u32 %v722, 7
      %v724 = vsub.s32 %v721, %v723
      %v725 = vrot.slane %v717, %v724
      %v727 = vunpack.c.l.s4 1934713408
      %v728 = vunpack.c.0.s8 %v727
      %v729 = vlaneseq
      %v730 = vshrl.u32 %v729, 7
      %v731 = vsub.s32 %v728, %v730
      %v732 = vrot.slane %v718, %v731
      %v733 = vcombine.high %v725, 0
      %v734 = vcombine.high %v732, 0
      %v737 = vunpack.c.l.s4 1983009808
      %v738 = vunpack.c.0.s8 %v737
      %v739 = vlaneseq
      %v740 = vshrl.u32 %v739, 7
      %v741 = vsub.s32 %v738, %v740
      %v742 = vrot.slane %v696, %v741
      %v745 = vunpack.c.l.s4 1983009808
      %v746 = vunpack.c.0.s8 %v745
      %v747 = vlaneseq
      %v748 = vshrl.u32 %v747, 7
      %v749 = vsub.s32 %v746, %v748
      %v750 = vrot.slane %v700, %v749
      %v751 = vcombine.low %v742, %v750
      %v752 = vcombine.high %v742, %v750
      %v754 = vunpack.c.l.s4 1934713408
      %v755 = vunpack.c.0.s8 %v754
      %v756 = vlaneseq
      %v757 = vshrl.u32 %v756, 7
      %v758 = vsub.s32 %v755, %v757
      %v759 = vrot.slane %v751, %v758
      %v761 = vunpack.c.l.s4 1934713408
      %v762 = vunpack.c.0.s8 %v761
      %v763 = vlaneseq
      %v764 = vshrl.u32 %v763, 7
      %v765 = vsub.s32 %v762, %v764
      %v766 = vrot.slane %v752, %v765
      %v767 = vcombine.high %v759, 0
      %v768 = vcombine.high %v766, 0
      %v771 = vpack.i.b16 %v759, %v725
      %v773 = vshrl.u32 %v725, 16
      %v774 = vshrl.u32 %v759, 16
      %v775 = vpack.i.b16 %v774, %v773
      %v779 = vpack.i.b16 %v767, %v733
      %v781 = vshrl.u32 %v733, 16
      %v782 = vshrl.u32 %v767, 16
      %v783 = vpack.i.b16 %v782, %v781
      %v787 = vpack.i.b16 %v766, %v732
      %v789 = vshrl.u32 %v732, 16
      %v790 = vshrl.u32 %v766, 16
      %v791 = vpack.i.b16 %v790, %v789
      %v795 = vpack.i.b16 %v768, %v734
      %v797 = vshrl.u32 %v734, 16
      %v798 = vshrl.u32 %v768, 16
      %v799 = vpack.i.b16 %v798, %v797
      %v801 = vcombine.low %v771, %v787
      %v803 = vunpack.c.l.s4 1983009808
      %v804 = vunpack.c.0.s8 %v803
      %v805 = vlaneseq
      %v806 = vshrl.u32 %v805, 7
      %v807 = vsub.s32 %v804, %v806
      %v808 = vrot.slane %v801, %v807
      %v809 = vcombine.low %v779, %v795
      %v811 = vunpack.c.l.s4 1983009808
      %v812 = vunpack.c.0.s8 %v811
      %v813 = vlaneseq
      %v814 = vshrl.u32 %v813, 7
      %v815 = vsub.s32 %v812, %v814
      %v816 = vrot.slane %v809, %v815
      %v817 = vcombine.low %v808, %v816
      %v819 = vunpack.c.l.s4 1934713408
      %v820 = vunpack.c.0.s8 %v819
      %v821 = vlaneseq
      %v822 = vshrl.u32 %v821, 7
      %v823 = vsub.s32 %v820, %v822
      %v824 = vrot.slane %v817, %v823
      %v825 = vcombine.high %v824, 0
      %v826 = vcombine.low %v775, %v791
      %v828 = vunpack.c.l.s4 1983009808
      %v829 = vunpack.c.0.s8 %v828
      %v830 = vlaneseq
      %v831 = vshrl.u32 %v830, 7
      %v832 = vsub.s32 %v829, %v831
      %v833 = vrot.slane %v826, %v832
      %v834 = vcombine.low %v783, %v799
      %v836 = vunpack.c.l.s4 1983009808
      %v837 = vunpack.c.0.s8 %v836
      %v838 = vlaneseq
      %v839 = vshrl.u32 %v838, 7
      %v840 = vsub.s32 %v837, %v839
      %v841 = vrot.slane %v834, %v840
      %v842 = vcombine.low %v833, %v841
      %v844 = vunpack.c.l.s4 1934713408
      %v845 = vunpack.c.0.s8 %v844
      %v846 = vlaneseq
      %v847 = vshrl.u32 %v846, 7
      %v848 = vsub.s32 %v845, %v847
      %v849 = vrot.slane %v842, %v848
      %v850 = vcombine.high %v849, 0
      %v853 = vpack.i.b16 %v849, %v824
      %v855 = vshrl.u32 %v824, 16
      %v856 = vshrl.u32 %v849, 16
      %v857 = vpack.i.b16 %v856, %v855
      %v861 = vpack.i.b16 %v850, %v825
      %v863 = vshrl.u32 %v825, 16
      %v864 = vshrl.u32 %v850, 16
      %v865 = vpack.i.b16 %v864, %v863
      %867 = vst.msk [vmem:[%s338] sm:$0xf] %vm688, %v853
      %868 = vst.msk [vmem:[%s338 + $0x4] sm:$0xf] %vm688, %v857
      %869 = vst.msk [vmem:[%s338 + $0x8] sm:$0xf] %vm688, %v861
      %870 = vst.msk [vmem:[%s338 + $0xc] sm:$0xf] %vm688, %v865
      %p871 = scmp.lt.s32.totalorder %s23, 1
      %s872 = scalar_select %p871, %s23, 1
      %p873 = scmp.lt.s32.totalorder %s24, 0
      %s874 = scalar_select %p873, %s24, 0
      %s875 = sadd.s32 %s874, %s872
      %s876 = smul.addr %s875, 4
      %s877 = scalar_lea.vmem %s5, %s876
      %s878 = sadd.s32 %s23, %s24
      %p879 = scmp.lt.s32.totalorder %s878, 1
      %s880 = scalar_select %p879, %s878, 1
      %s881 = smul.addr %s880, 4
      %s882 = smul.addr %s881, 4
      %s883 = scalar_lea.vmem %s6, %s882
      %s884 = sadd.s32 %s23, %s24
      %p885 = scmp.lt.s32.totalorder %s884, 1
      %s886 = scalar_select %p885, %s884, 1
      %s887 = smul.addr %s886, 4
      %s888 = smul.addr %s887, 4
      %s889 = scalar_lea.vmem %s7, %s888
      // Predicated region
      $region41: #{residual_attention_block.3} parent=39 // pred_check
        %p890 = pneg %p163
      $region42: #{residual_attention_block.3} parent=39 // pred_check_branch
        %892 = sbr.rel (%p890) target = $region44
      $region43: #{residual_attention_block.3} parent=39 // pred_region
        _
      $region44: #{residual_attention_block.3} parent=39 // pred_fallthru
        _
      // Predicated region
      $region45: #{residual_attention_block.3} parent=39 // pred_check
        %p893 = pneg %p191
      $region46: #{residual_attention_block.3} parent=39 // pred_check_branch
        %895 = sbr.rel (%p893) target = $region48
      $region47: #{residual_attention_block.3} parent=39 // pred_region
        %s896 = sadd.s32 %s23, %s24
      $region48: #{residual_attention_block.3} parent=39 // pred_fallthru
        _
      // Predicated region
      $region49: #{residual_attention_block.3} parent=39 // pred_check
        %p897 = pneg %p219
      $region50: #{residual_attention_block.3} parent=39 // pred_check_branch
        %899 = sbr.rel (%p897) target = $region52
      $region51: #{residual_attention_block.3} parent=39 // pred_region
        %s900 = sadd.s32 %s23, %s24
      $region52: #{residual_attention_block.3} parent=39 // pred_fallthru
        _
    $region40: #{residual_attention_block.3} parent=5 // pred_fallthru
      _
    %p901 = scmp.le.s32.totalorder 2, %s14
    // Predicated region
    $region53: #{residual_attention_block.3} parent=5 // pred_check
      %p902 = pneg %p901
    $region54: #{residual_attention_block.3} parent=5 // pred_check_branch
      %904 = sbr.rel (%p902) target = $region56
    $region55: #{residual_attention_block.3} parent=5 // pred_region
      %s905 = ssub.s32 %s14, 2
      // Predicated region
      $region57: #{residual_attention_block.3} parent=55 // pred_check
        %p906 = pneg %p169
      $region58: #{residual_attention_block.3} parent=55 // pred_check_branch
        %908 = sbr.rel (%p906) target = $region60
      $region59: #{residual_attention_block.3} parent=55 // pred_region
        %p909 = scmp.lt.s32.totalorder %s25, 1
        %s910 = scalar_select %p909, %s25, 1
        %p911 = scmp.lt.s32.totalorder %s26, 0
        %s912 = scalar_select %p911, %s26, 0
        %s913 = sadd.s32 %s912, %s910
        %s914 = smul.addr %s913, 4
        %s915 = scalar_lea.vmem %s5, %s914
      $region60: #{residual_attention_block.3} parent=55 // pred_fallthru
        _
      // Predicated region
      $region61: #{residual_attention_block.3} parent=55 // pred_check
        %p916 = pneg %p197
      $region62: #{residual_attention_block.3} parent=55 // pred_check_branch
        %918 = sbr.rel (%p916) target = $region64
      $region63: #{residual_attention_block.3} parent=55 // pred_region
        %s919 = sadd.s32 %s25, %s26
        %p920 = scmp.lt.s32.totalorder %s919, 1
        %s921 = scalar_select %p920, %s919, 1
        %s922 = smul.addr %s921, 4
        %s923 = smul.addr %s922, 4
        %s924 = scalar_lea.vmem %s6, %s923
      $region64: #{residual_attention_block.3} parent=55 // pred_fallthru
        _
      // Predicated region
      $region65: #{residual_attention_block.3} parent=55 // pred_check
        %p925 = pneg %p225
      $region66: #{residual_attention_block.3} parent=55 // pred_check_branch
        %927 = sbr.rel (%p925) target = $region68
      $region67: #{residual_attention_block.3} parent=55 // pred_region
        %s928 = sadd.s32 %s25, %s26
        %p929 = scmp.lt.s32.totalorder %s928, 1
        %s930 = scalar_select %p929, %s928, 1
        %s931 = smul.addr %s930, 4
        %s932 = smul.addr %s931, 4
        %s933 = scalar_lea.vmem %s7, %s932
      $region68: #{residual_attention_block.3} parent=55 // pred_fallthru
        _
    $region56: #{residual_attention_block.3} parent=5 // pred_fallthru
      _
  $region6: #{residual_attention_block.3} parent=0 // loop_footer
    %s18 = sadd.s32 1, %s14
  $region7: #{residual_attention_block.3} parent=0 // loop_footer_branch
    %13 = sbr.rel target = $region3
  $region8: #{residual_attention_block.3} parent=0 // loop_exit
    _

// kernel: residual_attention_block.4
$region0: #{residual_attention_block.4}
  #allocation0 [shape = 'u32[]', space=smem, size = 0x4, offset = 0x4, fixed_abs, tag = 'smem constant byte address 0x4 - core index']
  #allocation1 [shape = 'u32[144,128]{1,0:T(1,128)}', space=vmem, size = 0x12000, scoped, tag = 'internal scratch']
  %s0 = inlined_call_operand.vmem [shape: bf16[2,8,32], index: 0, kind: input, shape index: {}]
  %s1 = inlined_call_operand.vmem [shape: bf16[2,4,8,8], index: 1, kind: input, shape index: {}]
  %s2 = inlined_call_operand.vmem [shape: bf16[2,4,8,8], index: 2, kind: input, shape index: {}]
  %s3 = inlined_call_operand.vmem [shape: bf16[2,8,32], index: 3, kind: output, shape index: {}]
  %s4 = sld [smem:[#allocation0]]
  $region45: #{residual_attention_block.4} parent=0
    _
  %s6 = ssub.s32 1, %s4
  %s7 = scalar_select 0, %s6, %s4
  loop: start=0, step=1, limit=4
  $region2: #{residual_attention_block.4} parent=0 // loop_pre_header
    _
  $region3: #{residual_attention_block.4} parent=0 // loop_header
    %s9 = sphi 0, %s13
    %p10 = scmp.ge.s32.totalorder %s9, 4
    %s16 = sphi 0, %s28
    %s17 = sphi 0, %s24
    %s18 = sphi 0, %s16
    %s19 = sphi 0, %s17
    %s20 = sphi 0, %s18
    %s21 = sphi 0, %s19
    %s33 = sphi 0, %s35
    %s36 = sphi 0, %s33
    %s37 = sphi 0, %s36
    %s53 = sphi 0, %s37
    %s59 = sphi 0, %s61
    %s62 = sphi 0, %s59
    %s63 = sphi 0, %s62
    %s79 = sphi 0, %s63
    %s85 = sphi 0, %s87
    %s88 = sphi 0, %s85
    %s89 = sphi 0, %s88
    %s105 = sphi 0, %s89
    %s113 = sphi 0, %s115
    %s116 = sphi 0, %s113
    %s117 = sphi 0, %s116
    %s133 = sphi 0, %s117
  $region4: #{residual_attention_block.4} parent=0 // loop_header_branch
    %12 = sbr.rel (%p10) target = $region8
  $region5: #{residual_attention_block.4} parent=0 // loop_body
    %s14 = ssub.s32 %s9, 1
    %s15 = ssub.s32 %s9, 2
    %s22 = sadd.s32 1, %s17
    %p23 = scmp.ge.s32.totalorder %s22, 1
    %s24 = scalar_select %p23, 0, %s22
    %s25 = sadd.s32 1, %s16
    %s26 = scalar_select %p23, %s25, %s16
    %p27 = scmp.ge.s32.totalorder %s26, 2
    %s28 = scalar_select %p27, 0, %s26
    %s29 = ssub.s32 %s16, %s28
    %s30 = ssub.s32 %s17, %s24
    %s31 = sor.u32 %s29, %s30
    %p32 = scmp.eq.s32.totalorder %s31, 0
    %s34 = sadd.s32 %s33, 1
    %s35 = scalar_select %p32, %s33, %s34
    %p38 = pneg %p32
    %p39 = scmp.eq.s32.totalorder %s9, 1
    %p40 = por %p38, %p39
    %p41 = scmp.ne.s32.totalorder %s33, %s36
    %p42 = scmp.eq.s32.totalorder %s9, 0
    %p43 = por %p41, %p42
    %p44 = scmp.ne.s32.totalorder %s33, %s36
    %p45 = scmp.eq.s32.totalorder %s14, 1
    %p46 = por %p44, %p45
    %p47 = scmp.ne.s32.totalorder %s36, %s37
    %p48 = scmp.eq.s32.totalorder %s14, 0
    %p49 = por %p47, %p48
    %p50 = scmp.ne.s32.totalorder %s36, %s37
    %p51 = scmp.eq.s32.totalorder %s15, 1
    %p52 = por %p50, %p51
    %p54 = scmp.ne.s32.totalorder %s37, %s53
    %p55 = scmp.eq.s32.totalorder %s15, 0
    %p56 = por %p54, %p55
    %s57 = ssub.s32 %s16, %s28
    %p58 = scmp.eq.s32.totalorder %s57, 0
    %s60 = sadd.s32 %s59, 1
    %s61 = scalar_select %p58, %s59, %s60
    %p64 = pneg %p58
    %p65 = scmp.eq.s32.totalorder %s9, 1
    %p66 = por %p64, %p65
    %p67 = scmp.ne.s32.totalorder %s59, %s62
    %p68 = scmp.eq.s32.totalorder %s9, 0
    %p69 = por %p67, %p68
    %p70 = scmp.ne.s32.totalorder %s59, %s62
    %p71 = scmp.eq.s32.totalorder %s14, 1
    %p72 = por %p70, %p71
    %p73 = scmp.ne.s32.totalorder %s62, %s63
    %p74 = scmp.eq.s32.totalorder %s14, 0
    %p75 = por %p73, %p74
    %p76 = scmp.ne.s32.totalorder %s62, %s63
    %p77 = scmp.eq.s32.totalorder %s15, 1
    %p78 = por %p76, %p77
    %p80 = scmp.ne.s32.totalorder %s63, %s79
    %p81 = scmp.eq.s32.totalorder %s15, 0
    %p82 = por %p80, %p81
    %s83 = ssub.s32 %s16, %s28
    %p84 = scmp.eq.s32.totalorder %s83, 0
    %s86 = sadd.s32 %s85, 1
    %s87 = scalar_select %p84, %s85, %s86
    %p90 = pneg %p84
    %p91 = scmp.eq.s32.totalorder %s9, 1
    %p92 = por %p90, %p91
    %p93 = scmp.ne.s32.totalorder %s85, %s88
    %p94 = scmp.eq.s32.totalorder %s9, 0
    %p95 = por %p93, %p94
    %p96 = scmp.ne.s32.totalorder %s85, %s88
    %p97 = scmp.eq.s32.totalorder %s14, 1
    %p98 = por %p96, %p97
    %p99 = scmp.ne.s32.totalorder %s88, %s89
    %p100 = scmp.eq.s32.totalorder %s14, 0
    %p101 = por %p99, %p100
    %p102 = scmp.ne.s32.totalorder %s88, %s89
    %p103 = scmp.eq.s32.totalorder %s15, 1
    %p104 = por %p102, %p103
    %p106 = scmp.ne.s32.totalorder %s89, %s105
    %p107 = scmp.eq.s32.totalorder %s15, 0
    %p108 = por %p106, %p107
    %s109 = ssub.s32 %s16, %s28
    %s110 = ssub.s32 %s17, %s24
    %s111 = sor.u32 %s109, %s110
    %p112 = scmp.eq.s32.totalorder %s111, 0
    %s114 = sadd.s32 %s113, 1
    %s115 = scalar_select %p112, %s113, %s114
    %p118 = pneg %p112
    %p119 = scmp.eq.s32.totalorder %s9, 1
    %p120 = por %p118, %p119
    %p121 = scmp.ne.s32.totalorder %s113, %s116
    %p122 = scmp.eq.s32.totalorder %s9, 0
    %p123 = por %p121, %p122
    %p124 = scmp.ne.s32.totalorder %s113, %s116
    %p125 = scmp.eq.s32.totalorder %s14, 1
    %p126 = por %p124, %p125
    %p127 = scmp.ne.s32.totalorder %s116, %s117
    %p128 = scmp.eq.s32.totalorder %s14, 0
    %p129 = por %p127, %p128
    %p130 = scmp.ne.s32.totalorder %s116, %s117
    %p131 = scmp.eq.s32.totalorder %s15, 1
    %p132 = por %p130, %p131
    %p134 = scmp.ne.s32.totalorder %s117, %s133
    %p135 = scmp.eq.s32.totalorder %s15, 0
    %p136 = por %p134, %p135
    %p137 = scmp.le.s32.totalorder 1, %s9
    %p138 = scmp.lt.s32.totalorder %s9, 3
    %p139 = pnand %p137, %p138
    %p140 = pneg %p139
    // Predicated region
    $region9: #{residual_attention_block.4} parent=5 // pred_check
      _
    $region10: #{residual_attention_block.4} parent=5 // pred_check_branch
      %142 = sbr.rel (%p139) target = $region12
    $region11: #{residual_attention_block.4} parent=5 // pred_region
      %s143 = ssub.s32 %s9, 1
    $region12: #{residual_attention_block.4} parent=5 // pred_fallthru
      _
    %p144 = scmp.lt.s32.totalorder %s9, 2
    // Predicated region
    $region13: #{residual_attention_block.4} parent=5 // pred_check
      %p145 = pneg %p144
    $region14: #{residual_attention_block.4} parent=5 // pred_check_branch
      %147 = sbr.rel (%p145) target = $region16
    $region15: #{residual_attention_block.4} parent=5 // pred_region
      // Predicated region
      $region17: #{residual_attention_block.4} parent=15 // pred_check
        %p148 = pneg %p43
      $region18: #{residual_attention_block.4} parent=15 // pred_check_branch
        %150 = sbr.rel (%p148) target = $region20
      $region19: #{residual_attention_block.4} parent=15 // pred_region
        %p151 = scmp.lt.s32.totalorder %s16, 1
        %s152 = scalar_select %p151, %s16, 1
        %p153 = scmp.lt.s32.totalorder %s17, 0
        %s154 = scalar_select %p153, %s17, 0
        %s155 = sadd.s32 %s154, %s152
        %s156 = smul.addr %s155, 4
        %s157 = scalar_lea.vmem %s0, %s156
      $region20: #{residual_attention_block.4} parent=15 // pred_fallthru
        _
      // Predicated region
      $region21: #{residual_attention_block.4} parent=15 // pred_check
        %p158 = pneg %p69
      $region22: #{residual_attention_block.4} parent=15 // pred_check_branch
        %160 = sbr.rel (%p158) target = $region24
      $region23: #{residual_attention_block.4} parent=15 // pred_region
        %p161 = scmp.lt.s32.totalorder %s16, 1
        %s162 = scalar_select %p161, %s16, 1
        %s163 = smul.addr %s162, 4
        %s164 = smul.addr %s163, 4
        %s165 = scalar_lea.vmem %s1, %s164
      $region24: #{residual_attention_block.4} parent=15 // pred_fallthru
        _
      // Predicated region
      $region25: #{residual_attention_block.4} parent=15 // pred_check
        %p166 = pneg %p95
      $region26: #{residual_attention_block.4} parent=15 // pred_check_branch
        %168 = sbr.rel (%p166) target = $region28
      $region27: #{residual_attention_block.4} parent=15 // pred_region
        %p169 = scmp.lt.s32.totalorder %s16, 1
        %s170 = scalar_select %p169, %s16, 1
        %s171 = smul.addr %s170, 4
        %s172 = smul.addr %s171, 4
        %s173 = scalar_lea.vmem %s2, %s172
      $region28: #{residual_attention_block.4} parent=15 // pred_fallthru
        _
    $region16: #{residual_attention_block.4} parent=5 // pred_fallthru
      _
    %p174 = scmp.le.s32.totalorder 1, %s9
    %p175 = scmp.lt.s32.totalorder %s9, 3
    %p176 = pnand %p174, %p175
    %p177 = pneg %p176
    // Predicated region
    $region29: #{residual_attention_block.4} parent=5 // pred_check
      _
    $region30: #{residual_attention_block.4} parent=5 // pred_check_branch
      %179 = sbr.rel (%p176) target = $region32
    $region31: #{residual_attention_block.4} parent=5 // pred_region
      %s180 = ssub.s32 %s9, 1
      %p181 = scmp.lt.s32.totalorder %s18, 1
      %s182 = scalar_select %p181, %s18, 1
      %p183 = scmp.lt.s32.totalorder %s19, 0
      %s184 = scalar_select %p183, %s19, 0
      %s185 = sadd.s32 %s184, %s182
      %s186 = smul.addr %s185, 4
      %s187 = scalar_lea.vmem %s0, %s186
      %p188 = pneg %p49
      %p189 = pneg %p46
      %p190 = scmp.lt.s32.totalorder %s18, 1
      %s191 = scalar_select %p190, %s18, 1
      %s192 = smul.addr %s191, 4
      %s193 = smul.addr %s192, 4
      %s194 = scalar_lea.vmem %s1, %s193
      %p195 = pneg %p75
      %p196 = pneg %p72
      %p197 = scmp.lt.s32.totalorder %s18, 1
      %s198 = scalar_select %p197, %s18, 1
      %s199 = smul.addr %s198, 4
      %s200 = smul.addr %s199, 4
      %s201 = scalar_lea.vmem %s2, %s200
      %p202 = pneg %p101
      %p203 = pneg %p98
      %p204 = pneg %p129
      %p205 = pneg %p126
      %p206 = scmp.lt.s32.totalorder %s18, 1
      %s207 = scalar_select %p206, %s18, 1
      %p208 = scmp.lt.s32.totalorder %s19, 0
      %s209 = scalar_select %p208, %s19, 0
      %s210 = sadd.s32 %s209, %s207
      %s211 = smul.addr %s210, 4
      %s212 = scalar_lea.vmem %s3, %s211
      %p213 = scmp.lt.s32.totalorder %s18, 1
      %s214 = scalar_select %p213, %s18, 1
      %p215 = scmp.lt.s32.totalorder %s19, 0
      %s216 = scalar_select %p215, %s19, 0
      %s217 = sadd.s32 %s216, %s214
      %s218 = smul.addr %s217, 4
      %s219 = scalar_lea.vmem %s0, %s218
      %p220 = scmp.lt.s32.totalorder %s18, 1
      %s221 = scalar_select %p220, %s18, 1
      %s222 = smul.addr %s221, 4
      %s223 = smul.addr %s222, 4
      %s224 = scalar_lea.vmem %s1, %s223
      %p225 = scmp.lt.s32.totalorder %s18, 1
      %s226 = scalar_select %p225, %s18, 1
      %s227 = smul.addr %s226, 4
      %s228 = smul.addr %s227, 4
      %s229 = scalar_lea.vmem %s2, %s228
      %p230 = scmp.lt.s32.totalorder %s18, 1
      %s231 = scalar_select %p230, %s18, 1
      %p232 = scmp.lt.s32.totalorder %s19, 0
      %s233 = scalar_select %p232, %s19, 0
      %s234 = sadd.s32 %s233, %s231
      %s235 = smul.addr %s234, 4
      %s236 = scalar_lea.vmem %s3, %s235
      %v238 = vld [vmem:[%s219] sm:$0xf]
      %240 = vrot.lane.b32.xlu0 %v238, 120
      %v241 = vpop.permute.xlu0 %240
      %242 = vrot.lane.b32.xlu0 %v238, 112
      %v243 = vpop.permute.xlu0 %242
      %244 = vrot.lane.b32.xlu0 %v238, 104
      %v245 = vpop.permute.xlu0 %244
      %v248 = vpack.i.b16 %v241, %v238
      %v249 = vshrl.u32 %v238, 16
      %v250 = vshrl.u32 %v241, 16
      %v251 = vpack.i.b16 %v250, %v249
      %v254 = vpack.i.b16 %v245, %v243
      %v255 = vshrl.u32 %v243, 16
      %v256 = vshrl.u32 %v245, 16
      %v257 = vpack.i.b16 %v256, %v255
      %v260 = vunpack.c.l.s4 1983009808
      %v261 = vunpack.c.0.s8 %v260
      %v262 = vlaneseq
      %v263 = vshrl.u32 %v262, 7
      %v264 = vsub.s32 %v261, %v263
      %v265 = vrot.slane %v248, %v264
      %v268 = vunpack.c.l.s4 1983009808
      %v269 = vunpack.c.0.s8 %v268
      %v270 = vlaneseq
      %v271 = vshrl.u32 %v270, 7
      %v272 = vsub.s32 %v269, %v271
      %v273 = vrot.slane %v254, %v272
      %v274 = vcombine.low %v265, %v273
      %v275 = vcombine.high %v265, %v273
      %v277 = vunpack.c.l.s4 1934713408
      %v278 = vunpack.c.0.s8 %v277
      %v279 = vlaneseq
      %v280 = vshrl.u32 %v279, 7
      %v281 = vsub.s32 %v278, %v280
      %v282 = vrot.slane %v274, %v281
      %v284 = vunpack.c.l.s4 1934713408
      %v285 = vunpack.c.0.s8 %v284
      %v286 = vlaneseq
      %v287 = vshrl.u32 %v286, 7
      %v288 = vsub.s32 %v285, %v287
      %v289 = vrot.slane %v275, %v288
      %v290 = vcombine.high %v282, 0
      %v291 = vcombine.high %v289, 0
      %v294 = vunpack.c.l.s4 1983009808
      %v295 = vunpack.c.0.s8 %v294
      %v296 = vlaneseq
      %v297 = vshrl.u32 %v296, 7
      %v298 = vsub.s32 %v295, %v297
      %v299 = vrot.slane %v251, %v298
      %v302 = vunpack.c.l.s4 1983009808
      %v303 = vunpack.c.0.s8 %v302
      %v304 = vlaneseq
      %v305 = vshrl.u32 %v304, 7
      %v306 = vsub.s32 %v303, %v305
      %v307 = vrot.slane %v257, %v306
      %v308 = vcombine.low %v299, %v307
      %v309 = vcombine.high %v299, %v307
      %v311 = vunpack.c.l.s4 1934713408
      %v312 = vunpack.c.0.s8 %v311
      %v313 = vlaneseq
      %v314 = vshrl.u32 %v313, 7
      %v315 = vsub.s32 %v312, %v314
      %v316 = vrot.slane %v308, %v315
      %v318 = vunpack.c.l.s4 1934713408
      %v319 = vunpack.c.0.s8 %v318
      %v320 = vlaneseq
      %v321 = vshrl.u32 %v320, 7
      %v322 = vsub.s32 %v319, %v321
      %v323 = vrot.slane %v309, %v322
      %v324 = vcombine.high %v316, 0
      %v325 = vcombine.high %v323, 0
      %v326 = vcombine.low %v282, %v289
      %v328 = vunpack.c.l.s4 1983009808
      %v329 = vunpack.c.0.s8 %v328
      %v330 = vlaneseq
      %v331 = vshrl.u32 %v330, 7
      %v332 = vsub.s32 %v329, %v331
      %v333 = vrot.slane %v326, %v332
      %v334 = vcombine.low %v290, %v291
      %v336 = vunpack.c.l.s4 1983009808
      %v337 = vunpack.c.0.s8 %v336
      %v338 = vlaneseq
      %v339 = vshrl.u32 %v338, 7
      %v340 = vsub.s32 %v337, %v339
      %v341 = vrot.slane %v334, %v340
      %v342 = vcombine.low %v333, %v341
      %v344 = vunpack.c.l.s4 1934713408
      %v345 = vunpack.c.0.s8 %v344
      %v346 = vlaneseq
      %v347 = vshrl.u32 %v346, 7
      %v348 = vsub.s32 %v345, %v347
      %v349 = vrot.slane %v342, %v348
      %v350 = vcombine.high %v349, 0
      %v351 = vcombine.low %v316, %v323
      %v353 = vunpack.c.l.s4 1983009808
      %v354 = vunpack.c.0.s8 %v353
      %v355 = vlaneseq
      %v356 = vshrl.u32 %v355, 7
      %v357 = vsub.s32 %v354, %v356
      %v358 = vrot.slane %v351, %v357
      %v359 = vcombine.low %v324, %v325
      %v361 = vunpack.c.l.s4 1983009808
      %v362 = vunpack.c.0.s8 %v361
      %v363 = vlaneseq
      %v364 = vshrl.u32 %v363, 7
      %v365 = vsub.s32 %v362, %v364
      %v366 = vrot.slane %v359, %v365
      %v367 = vcombine.low %v358, %v366
      %v369 = vunpack.c.l.s4 1934713408
      %v370 = vunpack.c.0.s8 %v369
      %v371 = vlaneseq
      %v372 = vshrl.u32 %v371, 7
      %v373 = vsub.s32 %v370, %v372
      %v374 = vrot.slane %v367, %v373
      %v375 = vcombine.high %v374, 0
      %v378 = vpack.i.b16 %v374, %v349
      %v379 = vshrl.u32 %v349, 16
      %v380 = vshrl.u32 %v374, 16
      %v381 = vpack.i.b16 %v380, %v379
      %v384 = vpack.i.b16 %v375, %v350
      %v385 = vshrl.u32 %v350, 16
      %v386 = vshrl.u32 %v375, 16
      %v387 = vpack.i.b16 %v386, %v385
      %v388 = vld [vmem:[%s224] sm:$0xf]
      %v389 = vld [vmem:[%s224 + $0x4] sm:$0xf]
      %v390 = vld [vmem:[%s224 + $0x8] sm:$0xf]
      %v391 = vld [vmem:[%s224 + $0xc] sm:$0xf]
      %v392 = vld [vmem:[%s229] sm:$0xf]
      %v393 = vld [vmem:[%s229 + $0x4] sm:$0xf]
      %v394 = vld [vmem:[%s229 + $0x8] sm:$0xf]
      %v395 = vld [vmem:[%s229 + $0xc] sm:$0xf]
      %vm396 = vcmask 64512
      %v398 = vsel %vm396, %v378, 0
      %vm400 = vcmask 1043456
      %v402 = vsel %vm400, %v388, 0
      %404 = vmatprep.subr.bf16.mxu0 0
      %405 = vmatpush1.bf16.msra.mxu0 %v402
      %406 = vmatprep.subr.bf16.mxu0 0
      %407 = vmatpush1.bf16.msra.mxu0 0
      %408 = vmatprep.subr.bf16.mxu0 0
      %409 = vmatpush1.bf16.msra.mxu0 0
      %410 = vmatprep.subr.bf16.mxu0 0
      %411 = vmatpush1.bf16.msra.mxu0 0
      %412 = vmatprep.subr.bf16.mxu0 0
      %413 = vmatpush1.bf16.msra.mxu0 0
      %414 = vmatprep.subr.bf16.mxu0 0
      %415 = vmatpush1.bf16.msra.mxu0 0
      %416 = vmatprep.subr.bf16.mxu0 0
      %417 = vmatpush1.bf16.msra.mxu0 0
      %418 = vmatprep.subr.bf16.mxu0 0
      %419 = vmatpush1.bf16.msra.mxu0 0
      %420 = vmatprep.subr.bf16.mxu0 0
      %421 = vmatpush1.bf16.msra.mxu0 0
      %422 = vmatprep.subr.bf16.mxu0 0
      %423 = vmatpush1.bf16.msra.mxu0 0
      %424 = vmatprep.subr.bf16.mxu0 0
      %425 = vmatpush1.bf16.msra.mxu0 0
      %426 = vmatprep.subr.bf16.mxu0 0
      %427 = vmatpush1.bf16.msra.mxu0 0
      %428 = vmatprep.subr.bf16.mxu0 0
      %429 = vmatpush1.bf16.msra.mxu0 0
      %430 = vmatprep.subr.bf16.mxu0 0
      %431 = vmatpush1.bf16.msra.mxu0 0
      %432 = vmatprep.subr.bf16.mxu0 0
      %433 = vmatpush1.bf16.msra.mxu0 0
      %434 = vmatprep.subr.bf16.mxu0 0
      %435 = vmatpush1.bf16.msra.mxu0 0
      %436 = vmatprep.mubr.bf16.mxu0 0
      %437 = vmatmul.mubr.bf16.gmra.mrb[0].mxu0 %v398
      %v438 = vpop.f32.mrb[0].mxu0
      %v439 = vadd.f32 0.0, %v438
      %v440 = vpop.f32.mrb[0].mxu0
      %v441 = vpop.f32.mrb[0].mxu0
      %v442 = vpop.f32.mrb[0].mxu0
      %443 = vdwg.mxu0
      %v445 = vsel %vm396, %v381, 0
      %v448 = vsel %vm400, %v389, 0
      %450 = vmatprep.subr.bf16.mxu0 0
      %451 = vmatpush1.bf16.msra.mxu0 %v448
      %452 = vmatprep.subr.bf16.mxu0 0
      %453 = vmatpush1.bf16.msra.mxu0 0
      %454 = vmatprep.subr.bf16.mxu0 0
      %455 = vmatpush1.bf16.msra.mxu0 0
      %456 = vmatprep.subr.bf16.mxu0 0
      %457 = vmatpush1.bf16.msra.mxu0 0
      %458 = vmatprep.subr.bf16.mxu0 0
      %459 = vmatpush1.bf16.msra.mxu0 0
      %460 = vmatprep.subr.bf16.mxu0 0
      %461 = vmatpush1.bf16.msra.mxu0 0
      %462 = vmatprep.subr.bf16.mxu0 0
      %463 = vmatpush1.bf16.msra.mxu0 0
      %464 = vmatprep.subr.bf16.mxu0 0
      %465 = vmatpush1.bf16.msra.mxu0 0
      %466 = vmatprep.subr.bf16.mxu0 0
      %467 = vmatpush1.bf16.msra.mxu0 0
      %468 = vmatprep.subr.bf16.mxu0 0
      %469 = vmatpush1.bf16.msra.mxu0 0
      %470 = vmatprep.subr.bf16.mxu0 0
      %471 = vmatpush1.bf16.msra.mxu0 0
      %472 = vmatprep.subr.bf16.mxu0 0
      %473 = vmatpush1.bf16.msra.mxu0 0
      %474 = vmatprep.subr.bf16.mxu0 0
      %475 = vmatpush1.bf16.msra.mxu0 0
      %476 = vmatprep.subr.bf16.mxu0 0
      %477 = vmatpush1.bf16.msra.mxu0 0
      %478 = vmatprep.subr.bf16.mxu0 0
      %479 = vmatpush1.bf16.msra.mxu0 0
      %480 = vmatprep.subr.bf16.mxu0 0
      %481 = vmatpush1.bf16.msra.mxu0 0
      %482 = vmatprep.mubr.bf16.mxu0 0
      %483 = vmatmul.mubr.bf16.gmra.mrb[0].mxu0 %v445
      %v484 = vpop.f32.mrb[0].mxu0
      %v485 = vadd.f32 0.0, %v484
      %v486 = vpop.f32.mrb[0].mxu0
      %v487 = vpop.f32.mrb[0].mxu0
      %v488 = vpop.f32.mrb[0].mxu0
      %489 = vdwg.mxu0
      %v491 = vsel %vm396, %v384, 0
      %v494 = vsel %vm400, %v390, 0
      %496 = vmatprep.subr.bf16.mxu0 0
      %497 = vmatpush1.bf16.msra.mxu0 %v494
      %498 = vmatprep.subr.bf16.mxu0 0
      %499 = vmatpush1.bf16.msra.mxu0 0
      %500 = vmatprep.subr.bf16.mxu0 0
      %501 = vmatpush1.bf16.msra.mxu0 0
      %502 = vmatprep.subr.bf16.mxu0 0
      %503 = vmatpush1.bf16.msra.mxu0 0
      %504 = vmatprep.subr.bf16.mxu0 0
      %505 = vmatpush1.bf16.msra.mxu0 0
      %506 = vmatprep.subr.bf16.mxu0 0
      %507 = vmatpush1.bf16.msra.mxu0 0
      %508 = vmatprep.subr.bf16.mxu0 0
      %509 = vmatpush1.bf16.msra.mxu0 0
      %510 = vmatprep.subr.bf16.mxu0 0
      %511 = vmatpush1.bf16.msra.mxu0 0
      %512 = vmatprep.subr.bf16.mxu0 0
      %513 = vmatpush1.bf16.msra.mxu0 0
      %514 = vmatprep.subr.bf16.mxu0 0
      %515 = vmatpush1.bf16.msra.mxu0 0
      %516 = vmatprep.subr.bf16.mxu0 0
      %517 = vmatpush1.bf16.msra.mxu0 0
      %518 = vmatprep.subr.bf16.mxu0 0
      %519 = vmatpush1.bf16.msra.mxu0 0
      %520 = vmatprep.subr.bf16.mxu0 0
      %521 = vmatpush1.bf16.msra.mxu0 0
      %522 = vmatprep.subr.bf16.mxu0 0
      %523 = vmatpush1.bf16.msra.mxu0 0
      %524 = vmatprep.subr.bf16.mxu0 0
      %525 = vmatpush1.bf16.msra.mxu0 0
      %526 = vmatprep.subr.bf16.mxu0 0
      %527 = vmatpush1.bf16.msra.mxu0 0
      %528 = vmatprep.mubr.bf16.mxu0 0
      %529 = vmatmul.mubr.bf16.gmra.mrb[0].mxu0 %v491
      %v530 = vpop.f32.mrb[0].mxu0
      %v531 = vadd.f32 0.0, %v530
      %v532 = vpop.f32.mrb[0].mxu0
      %v533 = vpop.f32.mrb[0].mxu0
      %v534 = vpop.f32.mrb[0].mxu0
      %535 = vdwg.mxu0
      %v537 = vsel %vm396, %v387, 0
      %v540 = vsel %vm400, %v391, 0
      %542 = vmatprep.subr.bf16.mxu0 0
      %543 = vmatpush1.bf16.msra.mxu0 %v540
      %544 = vmatprep.subr.bf16.mxu0 0
      %545 = vmatpush1.bf16.msra.mxu0 0
      %546 = vmatprep.subr.bf16.mxu0 0
      %547 = vmatpush1.bf16.msra.mxu0 0
      %548 = vmatprep.subr.bf16.mxu0 0
      %549 = vmatpush1.bf16.msra.mxu0 0
      %550 = vmatprep.subr.bf16.mxu0 0
      %551 = vmatpush1.bf16.msra.mxu0 0
      %552 = vmatprep.subr.bf16.mxu0 0
      %553 = vmatpush1.bf16.msra.mxu0 0
      %554 = vmatprep.subr.bf16.mxu0 0
      %555 = vmatpush1.bf16.msra.mxu0 0
      %556 = vmatprep.subr.bf16.mxu0 0
      %557 = vmatpush1.bf16.msra.mxu0 0
      %558 = vmatprep.subr.bf16.mxu0 0
      %559 = vmatpush1.bf16.msra.mxu0 0
      %560 = vmatprep.subr.bf16.mxu0 0
      %561 = vmatpush1.bf16.msra.mxu0 0
      %562 = vmatprep.subr.bf16.mxu0 0
      %563 = vmatpush1.bf16.msra.mxu0 0
      %564 = vmatprep.subr.bf16.mxu0 0
      %565 = vmatpush1.bf16.msra.mxu0 0
      %566 = vmatprep.subr.bf16.mxu0 0
      %567 = vmatpush1.bf16.msra.mxu0 0
      %568 = vmatprep.subr.bf16.mxu0 0
      %569 = vmatpush1.bf16.msra.mxu0 0
      %570 = vmatprep.subr.bf16.mxu0 0
      %571 = vmatpush1.bf16.msra.mxu0 0
      %572 = vmatprep.subr.bf16.mxu0 0
      %573 = vmatpush1.bf16.msra.mxu0 0
      %574 = vmatprep.mubr.bf16.mxu0 0
      %575 = vmatmul.mubr.bf16.gmra.mrb[0].mxu0 %v537
      %v576 = vpop.f32.mrb[0].mxu0
      %v577 = vadd.f32 0.0, %v576
      %v578 = vpop.f32.mrb[0].mxu0
      %v579 = vpop.f32.mrb[0].mxu0
      %v580 = vpop.f32.mrb[0].mxu0
      %581 = vdwg.mxu0
      %v582 = vsel %vm396, %v439, -inf
      %583 = vmax.xlane.f32.xlu0 %v582
      %v584 = vpop.xlane.xlu0 %583
      %v585 = vsel %vm396, %v485, -inf
      %586 = vmax.xlane.f32.xlu0 %v585
      %v587 = vpop.xlane.xlu0 %586
      %v588 = vsel %vm396, %v531, -inf
      %589 = vmax.xlane.f32.xlu0 %v588
      %v590 = vpop.xlane.xlu0 %589
      %v591 = vsel %vm396, %v577, -inf
      %592 = vmax.xlane.f32.xlu0 %v591
      %v593 = vpop.xlane.xlu0 %592
      %v594 = vmax.f32 %v584, -1e+30
      %v595 = vmax.f32 %v587, -1e+30
      %v596 = vmax.f32 %v590, -1e+30
      %v597 = vmax.f32 %v593, -1e+30
      %v598 = vsub.f32 -1e+30, %v594
      %v599 = vsub.f32 -1e+30, %v595
      %v600 = vsub.f32 -1e+30, %v596
      %v601 = vsub.f32 -1e+30, %v597
      %v602 = vmul.f32 %v598, 1.442695
      %v603 = vpow.pop %v602
      %v604 = vmul.f32 %v599, 1.442695
      %v605 = vpow.pop %v604
      %v606 = vmul.f32 %v600, 1.442695
      %v607 = vpow.pop %v606
      %v608 = vmul.f32 %v601, 1.442695
      %v609 = vpow.pop %v608
      %v610 = vsub.f32 %v439, %v594
      %v611 = vsub.f32 %v485, %v595
      %v612 = vsub.f32 %v531, %v596
      %v613 = vsub.f32 %v577, %v597
      %v614 = vmul.f32 %v610, 1.442695
      %v615 = vpow.pop %v614
      %v616 = vmul.f32 %v611, 1.442695
      %v617 = vpow.pop %v616
      %v618 = vmul.f32 %v612, 1.442695
      %v619 = vpow.pop %v618
      %v620 = vmul.f32 %v613, 1.442695
      %v621 = vpow.pop %v620
      %v622 = vmul.f32 %v603, 0.0
      %v623 = vmul.f32 %v605, 0.0
      %v624 = vmul.f32 %v607, 0.0
      %v625 = vmul.f32 %v609, 0.0
      %v626 = vsel %vm396, %v615, 0.0
      %627 = vadd.xlane.f32.xlu0 %v626
      %v628 = vpop.xlane.xlu0 %627
      %v629 = vsel %vm396, %v617, 0.0
      %630 = vadd.xlane.f32.xlu0 %v629
      %v631 = vpop.xlane.xlu0 %630
      %v632 = vsel %vm396, %v619, 0.0
      %633 = vadd.xlane.f32.xlu0 %v632
      %v634 = vpop.xlane.xlu0 %633
      %v635 = vsel %vm396, %v621, 0.0
      %636 = vadd.xlane.f32.xlu0 %v635
      %v637 = vpop.xlane.xlu0 %636
      %v638 = vadd.f32 %v622, %v628
      %v639 = vadd.f32 %v623, %v631
      %v640 = vadd.f32 %v624, %v634
      %v641 = vadd.f32 %v625, %v637
      %v642 = vpack.c.bf16 %v615, %v615
      %v643 = vpack.c.bf16 %v617, %v617
      %v644 = vpack.c.bf16 %v619, %v619
      %v645 = vpack.c.bf16 %v621, %v621
      %v647 = vsel %vm396, %v642, 0
      %v650 = vsel %vm400, %v392, 0
      %652 = vmatprep.subr.bf16.mxu0 0
      %653 = vmatpush1.bf16.msra.mxu0 %v650
      %654 = vmatprep.subr.bf16.mxu0 0
      %655 = vmatpush1.bf16.msra.mxu0 0
      %656 = vmatprep.subr.bf16.mxu0 0
      %657 = vmatpush1.bf16.msra.mxu0 0
      %658 = vmatprep.subr.bf16.mxu0 0
      %659 = vmatpush1.bf16.msra.mxu0 0
      %660 = vmatprep.subr.bf16.mxu0 0
      %661 = vmatpush1.bf16.msra.mxu0 0
      %662 = vmatprep.subr.bf16.mxu0 0
      %663 = vmatpush1.bf16.msra.mxu0 0
      %664 = vmatprep.subr.bf16.mxu0 0
      %665 = vmatpush1.bf16.msra.mxu0 0
      %666 = vmatprep.subr.bf16.mxu0 0
      %667 = vmatpush1.bf16.msra.mxu0 0
      %668 = vmatprep.subr.bf16.mxu0 0
      %669 = vmatpush1.bf16.msra.mxu0 0
      %670 = vmatprep.subr.bf16.mxu0 0
      %671 = vmatpush1.bf16.msra.mxu0 0
      %672 = vmatprep.subr.bf16.mxu0 0
      %673 = vmatpush1.bf16.msra.mxu0 0
      %674 = vmatprep.subr.bf16.mxu0 0
      %675 = vmatpush1.bf16.msra.mxu0 0
      %676 = vmatprep.subr.bf16.mxu0 0
      %677 = vmatpush1.bf16.msra.mxu0 0
      %678 = vmatprep.subr.bf16.mxu0 0
      %679 = vmatpush1.bf16.msra.mxu0 0
      %680 = vmatprep.subr.bf16.mxu0 0
      %681 = vmatpush1.bf16.msra.mxu0 0
      %682 = vmatprep.subr.bf16.mxu0 0
      %683 = vmatpush1.bf16.msra.mxu0 0
      %684 = vmatprep.mubr.bf16.mxu0 0
      %685 = vmatmul.mubr.bf16.gmra.mrb[0].mxu0 %v647
      %v686 = vpop.f32.mrb[0].mxu0
      %v687 = vadd.f32 0.0, %v686
      %v688 = vpop.f32.mrb[0].mxu0
      %v689 = vpop.f32.mrb[0].mxu0
      %v690 = vpop.f32.mrb[0].mxu0
      %691 = vdwg.mxu0
      %v693 = vsel %vm396, %v643, 0
      %v696 = vsel %vm400, %v393, 0
      %698 = vmatprep.subr.bf16.mxu0 0
      %699 = vmatpush1.bf16.msra.mxu0 %v696
      %700 = vmatprep.subr.bf16.mxu0 0
      %701 = vmatpush1.bf16.msra.mxu0 0
      %702 = vmatprep.subr.bf16.mxu0 0
      %703 = vmatpush1.bf16.msra.mxu0 0
      %704 = vmatprep.subr.bf16.mxu0 0
      %705 = vmatpush1.bf16.msra.mxu0 0
      %706 = vmatprep.subr.bf16.mxu0 0
      %707 = vmatpush1.bf16.msra.mxu0 0
      %708 = vmatprep.subr.bf16.mxu0 0
      %709 = vmatpush1.bf16.msra.mxu0 0
      %710 = vmatprep.subr.bf16.mxu0 0
      %711 = vmatpush1.bf16.msra.mxu0 0
      %712 = vmatprep.subr.bf16.mxu0 0
      %713 = vmatpush1.bf16.msra.mxu0 0
      %714 = vmatprep.subr.bf16.mxu0 0
      %715 = vmatpush1.bf16.msra.mxu0 0
      %716 = vmatprep.subr.bf16.mxu0 0
      %717 = vmatpush1.bf16.msra.mxu0 0
      %718 = vmatprep.subr.bf16.mxu0 0
      %719 = vmatpush1.bf16.msra.mxu0 0
      %720 = vmatprep.subr.bf16.mxu0 0
      %721 = vmatpush1.bf16.msra.mxu0 0
      %722 = vmatprep.subr.bf16.mxu0 0
      %723 = vmatpush1.bf16.msra.mxu0 0
      %724 = vmatprep.subr.bf16.mxu0 0
      %725 = vmatpush1.bf16.msra.mxu0 0
      %726 = vmatprep.subr.bf16.mxu0 0
      %727 = vmatpush1.bf16.msra.mxu0 0
      %728 = vmatprep.subr.bf16.mxu0 0
      %729 = vmatpush1.bf16.msra.mxu0 0
      %730 = vmatprep.mubr.bf16.mxu0 0
      %731 = vmatmul.mubr.bf16.gmra.mrb[0].mxu0 %v693
      %v732 = vpop.f32.mrb[0].mxu0
      %v733 = vadd.f32 0.0, %v732
      %v734 = vpop.f32.mrb[0].mxu0
      %v735 = vpop.f32.mrb[0].mxu0
      %v736 = vpop.f32.mrb[0].mxu0
      %737 = vdwg.mxu0
      %v739 = vsel %vm396, %v644, 0
      %v742 = vsel %vm400, %v394, 0
      %744 = vmatprep.subr.bf16.mxu0 0
      %745 = vmatpush1.bf16.msra.mxu0 %v742
      %746 = vmatprep.subr.bf16.mxu0 0
      %747 = vmatpush1.bf16.msra.mxu0 0
      %748 = vmatprep.subr.bf16.mxu0 0
      %749 = vmatpush1.bf16.msra.mxu0 0
      %750 = vmatprep.subr.bf16.mxu0 0
      %751 = vmatpush1.bf16.msra.mxu0 0
      %752 = vmatprep.subr.bf16.mxu0 0
      %753 = vmatpush1.bf16.msra.mxu0 0
      %754 = vmatprep.subr.bf16.mxu0 0
      %755 = vmatpush1.bf16.msra.mxu0 0
      %756 = vmatprep.subr.bf16.mxu0 0
      %757 = vmatpush1.bf16.msra.mxu0 0
      %758 = vmatprep.subr.bf16.mxu0 0
      %759 = vmatpush1.bf16.msra.mxu0 0
      %760 = vmatprep.subr.bf16.mxu0 0
      %761 = vmatpush1.bf16.msra.mxu0 0
      %762 = vmatprep.subr.bf16.mxu0 0
      %763 = vmatpush1.bf16.msra.mxu0 0
      %764 = vmatprep.subr.bf16.mxu0 0
      %765 = vmatpush1.bf16.msra.mxu0 0
      %766 = vmatprep.subr.bf16.mxu0 0
      %767 = vmatpush1.bf16.msra.mxu0 0
      %768 = vmatprep.subr.bf16.mxu0 0
      %769 = vmatpush1.bf16.msra.mxu0 0
      %770 = vmatprep.subr.bf16.mxu0 0
      %771 = vmatpush1.bf16.msra.mxu0 0
      %772 = vmatprep.subr.bf16.mxu0 0
      %773 = vmatpush1.bf16.msra.mxu0 0
      %774 = vmatprep.subr.bf16.mxu0 0
      %775 = vmatpush1.bf16.msra.mxu0 0
      %776 = vmatprep.mubr.bf16.mxu0 0
      %777 = vmatmul.mubr.bf16.gmra.mrb[0].mxu0 %v739
      %v778 = vpop.f32.mrb[0].mxu0
      %v779 = vadd.f32 0.0, %v778
      %v780 = vpop.f32.mrb[0].mxu0
      %v781 = vpop.f32.mrb[0].mxu0
      %v782 = vpop.f32.mrb[0].mxu0
      %783 = vdwg.mxu0
      %v785 = vsel %vm396, %v645, 0
      %v788 = vsel %vm400, %v395, 0
      %790 = vmatprep.subr.bf16.mxu0 0
      %791 = vmatpush1.bf16.msra.mxu0 %v788
      %792 = vmatprep.subr.bf16.mxu0 0
      %793 = vmatpush1.bf16.msra.mxu0 0
      %794 = vmatprep.subr.bf16.mxu0 0
      %795 = vmatpush1.bf16.msra.mxu0 0
      %796 = vmatprep.subr.bf16.mxu0 0
      %797 = vmatpush1.bf16.msra.mxu0 0
      %798 = vmatprep.subr.bf16.mxu0 0
      %799 = vmatpush1.bf16.msra.mxu0 0
      %800 = vmatprep.subr.bf16.mxu0 0
      %801 = vmatpush1.bf16.msra.mxu0 0
      %802 = vmatprep.subr.bf16.mxu0 0
      %803 = vmatpush1.bf16.msra.mxu0 0
      %804 = vmatprep.subr.bf16.mxu0 0
      %805 = vmatpush1.bf16.msra.mxu0 0
      %806 = vmatprep.subr.bf16.mxu0 0
      %807 = vmatpush1.bf16.msra.mxu0 0
      %808 = vmatprep.subr.bf16.mxu0 0
      %809 = vmatpush1.bf16.msra.mxu0 0
      %810 = vmatprep.subr.bf16.mxu0 0
      %811 = vmatpush1.bf16.msra.mxu0 0
      %812 = vmatprep.subr.bf16.mxu0 0
      %813 = vmatpush1.bf16.msra.mxu0 0
      %814 = vmatprep.subr.bf16.mxu0 0
      %815 = vmatpush1.bf16.msra.mxu0 0
      %816 = vmatprep.subr.bf16.mxu0 0
      %817 = vmatpush1.bf16.msra.mxu0 0
      %818 = vmatprep.subr.bf16.mxu0 0
      %819 = vmatpush1.bf16.msra.mxu0 0
      %820 = vmatprep.subr.bf16.mxu0 0
      %821 = vmatpush1.bf16.msra.mxu0 0
      %822 = vmatprep.mubr.bf16.mxu0 0
      %823 = vmatmul.mubr.bf16.gmra.mrb[0].mxu0 %v785
      %v824 = vpop.f32.mrb[0].mxu0
      %v825 = vadd.f32 0.0, %v824
      %v826 = vpop.f32.mrb[0].mxu0
      %v827 = vpop.f32.mrb[0].mxu0
      %v828 = vpop.f32.mrb[0].mxu0
      %829 = vdwg.mxu0
      %v830 = vadd.f32 %v622, %v687
      %v831 = vadd.f32 %v623, %v733
      %v832 = vadd.f32 %v624, %v779
      %v833 = vadd.f32 %v625, %v825
      %v834 = vrcp.pop %v638
      %v835 = vrcp.pop %v639
      %v836 = vrcp.pop %v640
      %v837 = vrcp.pop %v641
      %v838 = vmul.f32 %v830, %v834
      %v839 = vmul.f32 %v831, %v835
      %v840 = vmul.f32 %v832, %v836
      %v841 = vmul.f32 %v833, %v837
      %v842 = vcombine.low %v838, %v840
      %v843 = vcombine.high %v838, %v840
      %v845 = vunpack.c.l.s4 1983009808
      %v846 = vunpack.c.0.s8 %v845
      %v847 = vlaneseq
      %v848 = vshrl.u32 %v847, 7
      %v849 = vsub.s32 %v846, %v848
      %v850 = vrot.slane %v842, %v849
      %v852 = vunpack.c.l.s4 1983009808
      %v853 = vunpack.c.0.s8 %v852
      %v854 = vlaneseq
      %v855 = vshrl.u32 %v854, 7
      %v856 = vsub.s32 %v853, %v855
      %v857 = vrot.slane %v843, %v856
      %v858 = vcombine.low %v839, %v841
      %v859 = vcombine.high %v839, %v841
      %v861 = vunpack.c.l.s4 1983009808
      %v862 = vunpack.c.0.s8 %v861
      %v863 = vlaneseq
      %v864 = vshrl.u32 %v863, 7
      %v865 = vsub.s32 %v862, %v864
      %v866 = vrot.slane %v858, %v865
      %v868 = vunpack.c.l.s4 1983009808
      %v869 = vunpack.c.0.s8 %v868
      %v870 = vlaneseq
      %v871 = vshrl.u32 %v870, 7
      %v872 = vsub.s32 %v869, %v871
      %v873 = vrot.slane %v859, %v872
      %v874 = vcombine.low %v850, %v866
      %v875 = vcombine.high %v850, %v866
      %v877 = vunpack.c.l.s4 1934713408
      %v878 = vunpack.c.0.s8 %v877
      %v879 = vlaneseq
      %v880 = vshrl.u32 %v879, 7
      %v881 = vsub.s32 %v878, %v880
      %v882 = vrot.slane %v874, %v881
      %v884 = vunpack.c.l.s4 1934713408
      %v885 = vunpack.c.0.s8 %v884
      %v886 = vlaneseq
      %v887 = vshrl.u32 %v886, 7
      %v888 = vsub.s32 %v885, %v887
      %v889 = vrot.slane %v875, %v888
      %v890 = vcombine.low %v857, %v873
      %v891 = vcombine.high %v857, %v873
      %v893 = vunpack.c.l.s4 1934713408
      %v894 = vunpack.c.0.s8 %v893
      %v895 = vlaneseq
      %v896 = vshrl.u32 %v895, 7
      %v897 = vsub.s32 %v894, %v896
      %v898 = vrot.slane %v890, %v897
      %v900 = vunpack.c.l.s4 1934713408
      %v901 = vunpack.c.0.s8 %v900
      %v902 = vlaneseq
      %v903 = vshrl.u32 %v902, 7
      %v904 = vsub.s32 %v901, %v903
      %v905 = vrot.slane %v891, %v904
      %v906 = vcombine.high %v882, 0.0
      %v907 = vcombine.high %v889, 0.0
      %v908 = vcombine.high %v898, 0.0
      %v909 = vcombine.high %v905, 0.0
      %v910 = vcombine.low %v882, %v889
      %v912 = vunpack.c.l.s4 1983009808
      %v913 = vunpack.c.0.s8 %v912
      %v914 = vlaneseq
      %v915 = vshrl.u32 %v914, 7
      %v916 = vsub.s32 %v913, %v915
      %v917 = vrot.slane %v910, %v916
      %v918 = vcombine.low %v906, %v907
      %v920 = vunpack.c.l.s4 1983009808
      %v921 = vunpack.c.0.s8 %v920
      %v922 = vlaneseq
      %v923 = vshrl.u32 %v922, 7
      %v924 = vsub.s32 %v921, %v923
      %v925 = vrot.slane %v918, %v924
      %v926 = vcombine.low %v898, %v905
      %v928 = vunpack.c.l.s4 1983009808
      %v929 = vunpack.c.0.s8 %v928
      %v930 = vlaneseq
      %v931 = vshrl.u32 %v930, 7
      %v932 = vsub.s32 %v929, %v931
      %v933 = vrot.slane %v926, %v932
      %v934 = vcombine.low %v908, %v909
      %v936 = vunpack.c.l.s4 1983009808
      %v937 = vunpack.c.0.s8 %v936
      %v938 = vlaneseq
      %v939 = vshrl.u32 %v938, 7
      %v940 = vsub.s32 %v937, %v939
      %v941 = vrot.slane %v934, %v940
      %v942 = vcombine.low %v917, %v925
      %v943 = vcombine.high %v917, %v925
      %v945 = vunpack.c.l.s4 1934713408
      %v946 = vunpack.c.0.s8 %v945
      %v947 = vlaneseq
      %v948 = vshrl.u32 %v947, 7
      %v949 = vsub.s32 %v946, %v948
      %v950 = vrot.slane %v942, %v949
      %v952 = vunpack.c.l.s4 1934713408
      %v953 = vunpack.c.0.s8 %v952
      %v954 = vlaneseq
      %v955 = vshrl.u32 %v954, 7
      %v956 = vsub.s32 %v953, %v955
      %v957 = vrot.slane %v943, %v956
      %v958 = vcombine.low %v933, %v941
      %v959 = vcombine.high %v933, %v941
      %v961 = vunpack.c.l.s4 1934713408
      %v962 = vunpack.c.0.s8 %v961
      %v963 = vlaneseq
      %v964 = vshrl.u32 %v963, 7
      %v965 = vsub.s32 %v962, %v964
      %v966 = vrot.slane %v958, %v965
      %v968 = vunpack.c.l.s4 1934713408
      %v969 = vunpack.c.0.s8 %v968
      %v970 = vlaneseq
      %v971 = vshrl.u32 %v970, 7
      %v972 = vsub.s32 %v969, %v971
      %v973 = vrot.slane %v959, %v972
      %v974 = vcombine.low %v950, %v966
      %v975 = vcombine.high %v950, %v966
      %v976 = vcombine.low %v957, %v973
      %v977 = vcombine.high %v957, %v973
      %979 = vrot.lane.b32.xlu0 %v975, 8
      %v980 = vpop.permute.xlu0 %979
      %983 = vrot.lane.b32.xlu0 %v976, 16
      %v984 = vpop.permute.xlu0 %983
      %987 = vrot.lane.b32.xlu0 %v977, 24
      %v988 = vpop.permute.xlu0 %987
      %v990 = vsel %vm396, %v974, %v980
      %vm991 = vcmask 130048
      %v992 = vsel %vm991, %v990, %v984
      %vm993 = vcmask 195584
      %v994 = vsel %vm993, %v992, %v988
      %v995 = vpack.c.bf16 %v994, %v994
      %vm996 = vcmask 257024
      %997 = vst.msk [vmem:[%s236] sm:$0xf] %vm996, %v995
      %p998 = scmp.lt.s32.totalorder %s18, 1
      %s999 = scalar_select %p998, %s18, 1
      %p1000 = scmp.lt.s32.totalorder %s19, 0
      %s1001 = scalar_select %p1000, %s19, 0
      %s1002 = sadd.s32 %s1001, %s999
      %s1003 = smul.addr %s1002, 4
      %s1004 = scalar_lea.vmem %s3, %s1003
      // Predicated region
      $region33: #{residual_attention_block.4} parent=31 // pred_check
        %p1005 = pneg %p126
      $region34: #{residual_attention_block.4} parent=31 // pred_check_branch
        %1007 = sbr.rel (%p1005) target = $region36
      $region35: #{residual_attention_block.4} parent=31 // pred_region
        _
      $region36: #{residual_attention_block.4} parent=31 // pred_fallthru
        _
    $region32: #{residual_attention_block.4} parent=5 // pred_fallthru
      _
    %p1008 = scmp.le.s32.totalorder 2, %s9
    // Predicated region
    $region37: #{residual_attention_block.4} parent=5 // pred_check
      %p1009 = pneg %p1008
    $region38: #{residual_attention_block.4} parent=5 // pred_check_branch
      %1011 = sbr.rel (%p1009) target = $region40
    $region39: #{residual_attention_block.4} parent=5 // pred_region
      %s1012 = ssub.s32 %s9, 2
      // Predicated region
      $region41: #{residual_attention_block.4} parent=39 // pred_check
        %p1013 = pneg %p132
      $region42: #{residual_attention_block.4} parent=39 // pred_check_branch
        %1015 = sbr.rel (%p1013) target = $region44
      $region43: #{residual_attention_block.4} parent=39 // pred_region
        %p1016 = scmp.lt.s32.totalorder %s20, 1
        %s1017 = scalar_select %p1016, %s20, 1
        %p1018 = scmp.lt.s32.totalorder %s21, 0
        %s1019 = scalar_select %p1018, %s21, 0
        %s1020 = sadd.s32 %s1019, %s1017
        %s1021 = smul.addr %s1020, 4
        %s1022 = scalar_lea.vmem %s3, %s1021
      $region44: #{residual_attention_block.4} parent=39 // pred_fallthru
        _
    $region40: #{residual_attention_block.4} parent=5 // pred_fallthru
      _
  $region6: #{residual_attention_block.4} parent=0 // loop_footer
    %s13 = sadd.s32 1, %s9
  $region7: #{residual_attention_block.4} parent=0 // loop_footer_branch
    %8 = sbr.rel target = $region3
  $region8: #{residual_attention_block.4} parent=0 // loop_exit
    _

</llo_original>
